<compile_context>
chip_gen: v6e
topology: v6e:2x2x1
jax: 0.10.0
libtpu: 0.0.40
codegen_flags: <defaults>
</compile_context>

<pallas_src>
import sys

import jax
import jax.numpy as jnp
from jax import lax
from jax.experimental import pallas as pl
from jax.experimental.pallas import tpu as pltpu

LN_EPS = 1e-5  # PyTorch nn.LayerNorm default
_MIB = 1024 * 1024

# TODO(synk): downsample branch (in_sz != out_sz => Linear+LayerNorm on the skip
#             path) is not implemented; this kernel requires in_sz == out_sz.
# TODO(synk): nn.Dropout is statically inactive at the default p=1.0
#             (`if self.p < 1.0`), so no dropout is emitted in the kernel.
# TODO(synk): for very large feature widths (F_pad >~ 2.5k on v7x) the resident
#             FxF bf16 weights no longer fit VMEM; an N/K-tiled matmul grid with
#             an f32 accumulator would be required (not implemented here).


def _round_up(n, m):
    return ((n + m - 1) // m) * m


def _vmem_budget_bytes():
    """~75% of physical VMEM (leaves compiler-internal scratch headroom)."""
    try:
        cap = int(pltpu.get_tpu_info().vmem_capacity_bytes)
    except Exception:  # query unavailable -> assume the smallest target (v7x: 64 MiB/TC)
        cap = 64 * _MIB
    return max((cap * 3) // 4, 32 * _MIB)


def _choose_tile_b(B, F_pad, vmem_budget):
    """Largest batch tile that fits the VMEM budget, shrunk so the grid has
    >= 4 steps (>= 2 per TensorCore on v7x) whenever the batch allows it."""
    # Conservative footprint: 2 weight buffers (bf16 W1+W2), packed vectors,
    # double-buffered f32 x/out tiles plus ~6 rows of f32 temporaries.
    fixed = 2 * 2 * F_pad * F_pad * 2 + 2 * 8 * F_pad * 4 + 2 * _MIB
    per_row = (2 * 2 + 6) * F_pad * 4
    vmem_rows = max(8, (vmem_budget - fixed) // per_row)
    tile = 8
    for cand in (1024, 512, 256, 128, 64, 32, 16, 8):
        if cand <= vmem_rows:
            tile = cand
            break
    while tile > 64 and (B + tile - 1) // tile < 4:
        tile //= 2
    tile = min(tile, _round_up(B, 8))
    return max(8, int(tile))


def _make_kernel(n_real, tile_b, n_chunks):
    """Fused LN1->ReLU->fc1->LN2->ReLU->fc2->(+x) over one (tile_b, F_pad) tile."""
    inv_n = 1.0 / float(n_real)
    chunk = tile_b // n_chunks

    def _layernorm(h, gamma, beta):
        # Single fused pass: s1 = sum(h), s2 = sum(h*h). Padded lanes are exact
        # zeros (zero-padded inputs / weights, gamma=beta=0 there), so no
        # masking is needed even when n_real < F_pad.
        s1 = jnp.sum(h, axis=-1, keepdims=True)
        s2 = jnp.sum(h * h, axis=-1, keepdims=True)
        mu = s1 * inv_n
        var = jnp.maximum(s2 * inv_n - mu * mu, 0.0)
        return (h - mu) * lax.rsqrt(var + LN_EPS) * gamma + beta

    def kernel(x_ref, vecs_ref, w1_ref, w2_ref, o_ref):
        vecs = vecs_ref[...]                                   # (8, F_pad) f32
        g1, bt1, b1 = vecs[0:1], vecs[1:2], vecs[2:3]
        g2, bt2, b2 = vecs[3:4], vecs[4:5], vecs[5:6]

        # Independent row sub-chunks: the matmuls of one chunk can hide the
        # LayerNorm cross-lane reductions of the other; peak f32 temporary
        # footprint is halved.
        for c in range(n_chunks):
            rows = pl.ds(c * chunk, chunk)
            x = x_ref[rows, :].astype(jnp.float32)

            # LN1 -> ReLU -> fc1   (bf16 MXU operands, f32 accumulation)
            h = jnp.maximum(_layernorm(x, g1, bt1), 0.0)
            u = jnp.dot(h.astype(jnp.bfloat16), w1_ref[...],
                        preferred_element_type=jnp.float32) + b1

            # LN2 -> ReLU -> fc2
            v = jnp.maximum(_layernorm(u, g2, bt2), 0.0)
            w = jnp.dot(v.astype(jnp.bfloat16), w2_ref[...],
                        preferred_element_type=jnp.float32) + b2

            # Residual add; re-read x from the VMEM-resident tile rather than
            # keeping it live in vregs across both matmuls. No final activation.
            o_ref[rows, :] = (w + x_ref[rows, :].astype(jnp.float32)).astype(o_ref.dtype)

    return kernel


def _build_call(kernel, B_pad, F_pad, tile_b, out_dtype, vmem_limit, cost,
                single_buffer_weights):
    if single_buffer_weights:
        # Constant block index => fetched once; single buffer halves weight
        # VMEM (matters on v7x's 64 MiB VMEM).
        w_spec = pl.BlockSpec((F_pad, F_pad), lambda i: (0, 0),
                              pipeline_mode=pl.Buffered(buffer_count=1))
    else:
        w_spec = pl.BlockSpec((F_pad, F_pad), lambda i: (0, 0))
    vec_spec = pl.BlockSpec((8, F_pad), lambda i: (0, 0))      # packed LN/bias rows
    row_spec = pl.BlockSpec((tile_b, F_pad), lambda i: (i, 0))

    return pl.pallas_call(
        kernel,
        out_shape=jax.ShapeDtypeStruct((B_pad, F_pad), out_dtype),
        grid=(B_pad // tile_b,),
        in_specs=[row_spec,   # x
                  vec_spec,   # packed [ln1_g, ln1_b, b1, ln2_g, ln2_b, b2, 0, 0]
                  w_spec,     # W1 (in, out), bf16
                  w_spec],    # W2 (out, out), bf16
        out_specs=row_spec,
        compiler_params=pltpu.CompilerParams(
            dimension_semantics=("parallel",),   # batch blocks shard across v7x TCs
            vmem_limit_bytes=vmem_limit),
        cost_estimate=cost,
    )


def prepare_params(params):
    """One-time parameter preparation (hoisted out of the per-call hot path):
    pad the feature axis to a multiple of 128, cast weights to bf16, and pack
    the six LayerNorm/bias vectors into one (8, F_pad) operand."""
    F_in, F = params["w1"].shape
    assert F_in == F, "downsample=None requires in_sz == out_sz"
    F_pad = _round_up(F, 128)

    def pad_mat(a):
        return jnp.pad(a, ((0, F_pad - F), (0, F_pad - F)))

    def pad_vec(a):
        return jnp.pad(a.astype(jnp.float32), (0, F_pad - F))

    zeros = jnp.zeros((F_pad,), jnp.float32)
    vecs = jnp.stack([pad_vec(params["ln1_g"]), pad_vec(params["ln1_b"]),
                      pad_vec(params["b1"]),
                      pad_vec(params["ln2_g"]), pad_vec(params["ln2_b"]),
                      pad_vec(params["b2"]),
                      zeros, zeros], axis=0)
    return {
        "F": int(F),
        "F_pad": int(F_pad),
        "w1": pad_mat(params["w1"]).astype(jnp.bfloat16),   # (in, out) bf16 MXU weights
        "w2": pad_mat(params["w2"]).astype(jnp.bfloat16),
        "vecs": vecs,                                        # (8, F_pad) f32
    }


_WEIGHT_SINGLE_BUFFER_OK = True   # flipped (and logged) if pl.Buffered(1) is rejected
try:
    _JaxRuntimeError = jax.errors.JaxRuntimeError
except Exception:  # pragma: no cover
    _JaxRuntimeError = RuntimeError
_FALLBACK_ERRORS = (pltpu.LoweringException, NotImplementedError, ValueError,
                    TypeError, RuntimeError, _JaxRuntimeError)


def residual_layer_1d_v5(x, prepped, *, tile_b=None):
    """x: (B, F) float array. prepped: output of prepare_params()."""
    global _WEIGHT_SINGLE_BUFFER_OK

    B, F_in = x.shape
    F, F_pad = prepped["F"], prepped["F_pad"]
    assert F_in == F, "input feature size must match the prepared parameters"

    vmem_budget = _vmem_budget_bytes()
    if tile_b is None:
        tile_b = _choose_tile_b(B, F_pad, vmem_budget)
    tile_b = max(8, min(_round_up(tile_b, 8), _round_up(B, 8)))
    B_pad = _round_up(B, tile_b)
    n_chunks = 2 if (tile_b >= 16 and tile_b % 16 == 0) else 1

    needs_pad = (B_pad != B) or (F_pad != F)
    xp = jnp.pad(x, ((0, B_pad - B), (0, F_pad - F))) if needs_pad else x

    kernel = _make_kernel(F, tile_b, n_chunks)

    # Advisory cost estimate for XLA scheduling around the fused kernel.
    cost = pl.CostEstimate(
        flops=int(4 * B_pad * F_pad * F_pad),
        transcendentals=int(2 * B_pad),              # one rsqrt per row per LayerNorm
        bytes_accessed=int(2 * B_pad * F_pad * 4     # x read + out write (f32)
                           + 2 * F_pad * F_pad * 2   # bf16 W1 + W2
                           + 8 * F_pad * 4))         # packed vectors

    # Scoped VMEM: (conservatively) double-buffered weights + double-buffered
    # x/out tiles + f32 temporaries, clamped to ~75% of the physical VMEM.
    vmem_est = (2 * 2 * F_pad * F_pad * 2
                + 2 * 8 * F_pad * 4
                + 2 * 2 * tile_b * F_pad * 4
                + 8 * tile_b * F_pad * 4
                + 2 * _MIB)
    vmem_limit = int(min(max(vmem_est, 32 * _MIB), vmem_budget))

    args = (xp, prepped["vecs"], prepped["w1"], prepped["w2"])

    if _WEIGHT_SINGLE_BUFFER_OK:
        try:
            out_p = _build_call(kernel, B_pad, F_pad, tile_b, x.dtype, vmem_limit,
                                cost, single_buffer_weights=True)(*args)
        except _FALLBACK_ERRORS as e:   # narrow set; logged, never silent
            _WEIGHT_SINGLE_BUFFER_OK = False
            print("residual_layer_1d_v5: pl.Buffered(1) weight spec rejected "
                  f"({type(e).__name__}); falling back to double-buffered weights.",
                  file=sys.stderr)
            out_p = _build_call(kernel, B_pad, F_pad, tile_b, x.dtype, vmem_limit,
                                cost, single_buffer_weights=False)(*args)
    else:
        out_p = _build_call(kernel, B_pad, F_pad, tile_b, x.dtype, vmem_limit,
                            cost, single_buffer_weights=False)(*args)

    return out_p[:B, :F] if needs_pad else out_p


def init_params(key, in_sz, out_sz):
    """Deterministic init mimicking PyTorch defaults (uniform +-1/sqrt(fan_in))."""
    k1, k2, k3, k4 = jax.random.split(key, 4)
    bound1 = 1.0 / (in_sz ** 0.5)
    bound2 = 1.0 / (out_sz ** 0.5)
    # PyTorch Linear weight is (out, in); store transposed (in, out) for the kernel.
    w1_t = jax.random.uniform(k1, (in_sz, out_sz), jnp.float32, -bound1, bound1)
    b1 = jax.random.uniform(k2, (out_sz,), jnp.float32, -bound1, bound1)
    w2_t = jax.random.uniform(k3, (out_sz, out_sz), jnp.float32, -bound2, bound2)
    b2 = jax.random.uniform(k4, (out_sz,), jnp.float32, -bound2, bound2)
    return {
        "w1": w1_t, "b1": b1, "w2": w2_t, "b2": b2,
        "ln1_g": jnp.ones((in_sz,), jnp.float32),
        "ln1_b": jnp.zeros((in_sz,), jnp.float32),
        "ln2_g": jnp.ones((out_sz,), jnp.float32),
        "ln2_b": jnp.zeros((out_sz,), jnp.float32),
    }


def reference_forward(x, p):
    """Plain-JAX f32 reference of the PyTorch V5 forward (for a sanity check)."""
    def ln(h, g, b):
        mu = jnp.mean(h, axis=-1, keepdims=True)
        var = jnp.mean((h - mu) ** 2, axis=-1, keepdims=True)
        return (h - mu) / jnp.sqrt(var + LN_EPS) * g + b
    h = jnp.maximum(ln(x, p["ln1_g"], p["ln1_b"]), 0.0)
    u = h @ p["w1"] + p["b1"]
    v = jnp.maximum(ln(u, p["ln2_g"], p["ln2_b"]), 0.0)
    w = v @ p["w2"] + p["b2"]
    return w + x


if __name__ == "__main__":
    # downsample=None => in_sz == out_sz. Lane-dense features (multiple of 128)
    # and a batch that yields a >=4-step "parallel" grid (tile_b=128) so the
    # pipeline / megacore path is exercised while staying small.
    in_sz = out_sz = 256
    batch = 512

    key = jax.random.PRNGKey(0)
    kx, kp = jax.random.split(key)
    x = jax.random.normal(kx, (batch, in_sz), jnp.float32)
    raw_params = init_params(kp, in_sz, out_sz)

    prepped = prepare_params(raw_params)   # pad + bf16 cast paid once, off the hot path

    out = jax.block_until_ready(residual_layer_1d_v5(x, prepped))

    ref = reference_forward(x, raw_params)
    assert out.shape == (batch, out_sz)
    max_err = float(jnp.max(jnp.abs(out - ref)))
    # bf16 MXU operands vs f32 reference -> loosened tolerance.
    assert max_err < 5e-2, f"mismatch vs reference (max abs err {max_err})"

    print("KERNEL_OK")
</pallas_src>

<mosaic_0001>
module attributes {stable_mosaic.version = 11 : i64} {
  func.func @kernel(%arg0: i32, %arg1: memref<128x256xf32, #tpu.memory_space<vmem>>, %arg2: memref<8x256xf32, #tpu.memory_space<vmem>>, %arg3: memref<256x256xbf16, #tpu.memory_space<vmem>>, %arg4: memref<256x256xbf16, #tpu.memory_space<vmem>>, %arg5: memref<128x256xf32, #tpu.memory_space<vmem>>) attributes {dimension_semantics = [#tpu.dimension_semantics<parallel>], iteration_bounds = array<i64: 4>, scalar_prefetch = 0 : i64, scratch_operands = 0 : i64, tpu.core_type = #tpu.core_type<tc>, window_params = [{transform_indices = @transform_0, window_bounds = array<i64: 128, 256>}, {pipeline_mode = #tpu.pipeline_mode<synchronous>, transform_indices = @transform_1, window_bounds = array<i64: 8, 256>}, {pipeline_mode = #tpu.pipeline_mode<synchronous>, transform_indices = @transform_2, window_bounds = array<i64: 256, 256>}, {pipeline_mode = #tpu.pipeline_mode<synchronous>, transform_indices = @transform_3, window_bounds = array<i64: 256, 256>}, {transform_indices = @transform_4, window_bounds = array<i64: 128, 256>}]} {
    %c0 = arith.constant 0 : index
    %c0_0 = arith.constant 0 : index
    %0 = vector.load %arg2[%c0, %c0_0] : memref<8x256xf32, #tpu.memory_space<vmem>>, vector<8x256xf32>
    %1 = vector.extract_strided_slice %0 {offsets = [0, 0], sizes = [1, 256], strides = [1, 1]} : vector<8x256xf32> to vector<1x256xf32>
    %2 = vector.extract_strided_slice %0 {offsets = [1, 0], sizes = [1, 256], strides = [1, 1]} : vector<8x256xf32> to vector<1x256xf32>
    %3 = vector.extract_strided_slice %0 {offsets = [2, 0], sizes = [1, 256], strides = [1, 1]} : vector<8x256xf32> to vector<1x256xf32>
    %4 = vector.extract_strided_slice %0 {offsets = [3, 0], sizes = [1, 256], strides = [1, 1]} : vector<8x256xf32> to vector<1x256xf32>
    %5 = vector.extract_strided_slice %0 {offsets = [4, 0], sizes = [1, 256], strides = [1, 1]} : vector<8x256xf32> to vector<1x256xf32>
    %6 = vector.extract_strided_slice %0 {offsets = [5, 0], sizes = [1, 256], strides = [1, 1]} : vector<8x256xf32> to vector<1x256xf32>
    %c0_1 = arith.constant 0 : index
    %c0_2 = arith.constant 0 : index
    %7 = vector.load %arg1[%c0_1, %c0_2] : memref<128x256xf32, #tpu.memory_space<vmem>>, vector<64x256xf32>
    %cst = arith.constant dense<0.000000e+00> : vector<64xf32>
    %8 = vector.multi_reduction <add>, %7, %cst [1] : vector<64x256xf32> to vector<64xf32>
    %9 = vector.shape_cast %8 : vector<64xf32> to vector<64x1xf32>
    %10 = arith.mulf %7, %7 : vector<64x256xf32>
    %cst_3 = arith.constant dense<0.000000e+00> : vector<64xf32>
    %11 = vector.multi_reduction <add>, %10, %cst_3 [1] : vector<64x256xf32> to vector<64xf32>
    %12 = vector.shape_cast %11 : vector<64xf32> to vector<64x1xf32>
    %cst_4 = arith.constant 3.906250e-03 : f32
    %13 = vector.broadcast %cst_4 : f32 to vector<64x1xf32>
    %14 = arith.mulf %9, %13 : vector<64x1xf32>
    %cst_5 = arith.constant 3.906250e-03 : f32
    %15 = vector.broadcast %cst_5 : f32 to vector<64x1xf32>
    %16 = arith.mulf %12, %15 : vector<64x1xf32>
    %17 = arith.mulf %14, %14 : vector<64x1xf32>
    %18 = arith.subf %16, %17 : vector<64x1xf32>
    %cst_6 = arith.constant 0.000000e+00 : f32
    %19 = vector.broadcast %cst_6 : f32 to vector<64x1xf32>
    %20 = arith.maximumf %18, %19 : vector<64x1xf32>
    %21 = vector.broadcast %14 : vector<64x1xf32> to vector<64x256xf32>
    %22 = arith.subf %7, %21 : vector<64x256xf32>
    %cst_7 = arith.constant 9.99999974E-6 : f32
    %23 = vector.broadcast %cst_7 : f32 to vector<64x1xf32>
    %24 = arith.addf %20, %23 : vector<64x1xf32>
    %25 = math.rsqrt %24 : vector<64x1xf32>
    %26 = vector.broadcast %25 : vector<64x1xf32> to vector<64x256xf32>
    %27 = arith.mulf %22, %26 : vector<64x256xf32>
    %28 = vector.broadcast %1 : vector<1x256xf32> to vector<64x256xf32>
    %29 = arith.mulf %27, %28 : vector<64x256xf32>
    %30 = vector.broadcast %2 : vector<1x256xf32> to vector<64x256xf32>
    %31 = arith.addf %29, %30 : vector<64x256xf32>
    %cst_8 = arith.constant 0.000000e+00 : f32
    %32 = vector.broadcast %cst_8 : f32 to vector<64x256xf32>
    %33 = arith.maximumf %31, %32 : vector<64x256xf32>
    %34 = arith.truncf %33 : vector<64x256xf32> to vector<64x256xbf16>
    %c0_9 = arith.constant 0 : index
    %c0_10 = arith.constant 0 : index
    %35 = vector.load %arg3[%c0_9, %c0_10] : memref<256x256xbf16, #tpu.memory_space<vmem>>, vector<256x256xbf16>
    %cst_11 = arith.constant dense<0.000000e+00> : vector<64x256xf32>
    %36 = tpu.matmul %34, %35, %cst_11 {dimension_numbers = #tpu.dot_dimension_numbers<[1], [0], [0], [1], [0, 0, 1, 1], [], []>} : vector<64x256xbf16>, vector<256x256xbf16>, vector<64x256xf32> -> vector<64x256xf32>
    %37 = vector.broadcast %3 : vector<1x256xf32> to vector<64x256xf32>
    %38 = arith.addf %36, %37 : vector<64x256xf32>
    %cst_12 = arith.constant dense<0.000000e+00> : vector<64xf32>
    %39 = vector.multi_reduction <add>, %38, %cst_12 [1] : vector<64x256xf32> to vector<64xf32>
    %40 = vector.shape_cast %39 : vector<64xf32> to vector<64x1xf32>
    %41 = arith.mulf %38, %38 : vector<64x256xf32>
    %cst_13 = arith.constant dense<0.000000e+00> : vector<64xf32>
    %42 = vector.multi_reduction <add>, %41, %cst_13 [1] : vector<64x256xf32> to vector<64xf32>
    %43 = vector.shape_cast %42 : vector<64xf32> to vector<64x1xf32>
    %cst_14 = arith.constant 3.906250e-03 : f32
    %44 = vector.broadcast %cst_14 : f32 to vector<64x1xf32>
    %45 = arith.mulf %40, %44 : vector<64x1xf32>
    %cst_15 = arith.constant 3.906250e-03 : f32
    %46 = vector.broadcast %cst_15 : f32 to vector<64x1xf32>
    %47 = arith.mulf %43, %46 : vector<64x1xf32>
    %48 = arith.mulf %45, %45 : vector<64x1xf32>
    %49 = arith.subf %47, %48 : vector<64x1xf32>
    %cst_16 = arith.constant 0.000000e+00 : f32
    %50 = vector.broadcast %cst_16 : f32 to vector<64x1xf32>
    %51 = arith.maximumf %49, %50 : vector<64x1xf32>
    %52 = vector.broadcast %45 : vector<64x1xf32> to vector<64x256xf32>
    %53 = arith.subf %38, %52 : vector<64x256xf32>
    %cst_17 = arith.constant 9.99999974E-6 : f32
    %54 = vector.broadcast %cst_17 : f32 to vector<64x1xf32>
    %55 = arith.addf %51, %54 : vector<64x1xf32>
    %56 = math.rsqrt %55 : vector<64x1xf32>
    %57 = vector.broadcast %56 : vector<64x1xf32> to vector<64x256xf32>
    %58 = arith.mulf %53, %57 : vector<64x256xf32>
    %59 = vector.broadcast %4 : vector<1x256xf32> to vector<64x256xf32>
    %60 = arith.mulf %58, %59 : vector<64x256xf32>
    %61 = vector.broadcast %5 : vector<1x256xf32> to vector<64x256xf32>
    %62 = arith.addf %60, %61 : vector<64x256xf32>
    %cst_18 = arith.constant 0.000000e+00 : f32
    %63 = vector.broadcast %cst_18 : f32 to vector<64x256xf32>
    %64 = arith.maximumf %62, %63 : vector<64x256xf32>
    %65 = arith.truncf %64 : vector<64x256xf32> to vector<64x256xbf16>
    %c0_19 = arith.constant 0 : index
    %c0_20 = arith.constant 0 : index
    %66 = vector.load %arg4[%c0_19, %c0_20] : memref<256x256xbf16, #tpu.memory_space<vmem>>, vector<256x256xbf16>
    %cst_21 = arith.constant dense<0.000000e+00> : vector<64x256xf32>
    %67 = tpu.matmul %65, %66, %cst_21 {dimension_numbers = #tpu.dot_dimension_numbers<[1], [0], [0], [1], [0, 0, 1, 1], [], []>} : vector<64x256xbf16>, vector<256x256xbf16>, vector<64x256xf32> -> vector<64x256xf32>
    %68 = vector.broadcast %6 : vector<1x256xf32> to vector<64x256xf32>
    %69 = arith.addf %67, %68 : vector<64x256xf32>
    %c0_22 = arith.constant 0 : index
    %c0_23 = arith.constant 0 : index
    %70 = vector.load %arg1[%c0_22, %c0_23] : memref<128x256xf32, #tpu.memory_space<vmem>>, vector<64x256xf32>
    %71 = arith.addf %69, %70 : vector<64x256xf32>
    %c0_24 = arith.constant 0 : index
    %c0_25 = arith.constant 0 : index
    %72 = vector.load %arg5[%c0_24, %c0_25] : memref<128x256xf32, #tpu.memory_space<vmem>>, vector<64x256xf32>
    tpu.vector_store %arg5[%c0_24, %c0_25], %71 {strides = array<i32>} : memref<128x256xf32, #tpu.memory_space<vmem>>, vector<64x256xf32>,
    %c64 = arith.constant 64 : index
    %c0_26 = arith.constant 0 : index
    %73 = vector.load %arg1[%c64, %c0_26] : memref<128x256xf32, #tpu.memory_space<vmem>>, vector<64x256xf32>
    %cst_27 = arith.constant dense<0.000000e+00> : vector<64xf32>
    %74 = vector.multi_reduction <add>, %73, %cst_27 [1] : vector<64x256xf32> to vector<64xf32>
    %75 = vector.shape_cast %74 : vector<64xf32> to vector<64x1xf32>
    %76 = arith.mulf %73, %73 : vector<64x256xf32>
    %cst_28 = arith.constant dense<0.000000e+00> : vector<64xf32>
    %77 = vector.multi_reduction <add>, %76, %cst_28 [1] : vector<64x256xf32> to vector<64xf32>
    %78 = vector.shape_cast %77 : vector<64xf32> to vector<64x1xf32>
    %cst_29 = arith.constant 3.906250e-03 : f32
    %79 = vector.broadcast %cst_29 : f32 to vector<64x1xf32>
    %80 = arith.mulf %75, %79 : vector<64x1xf32>
    %cst_30 = arith.constant 3.906250e-03 : f32
    %81 = vector.broadcast %cst_30 : f32 to vector<64x1xf32>
    %82 = arith.mulf %78, %81 : vector<64x1xf32>
    %83 = arith.mulf %80, %80 : vector<64x1xf32>
    %84 = arith.subf %82, %83 : vector<64x1xf32>
    %cst_31 = arith.constant 0.000000e+00 : f32
    %85 = vector.broadcast %cst_31 : f32 to vector<64x1xf32>
    %86 = arith.maximumf %84, %85 : vector<64x1xf32>
    %87 = vector.broadcast %80 : vector<64x1xf32> to vector<64x256xf32>
    %88 = arith.subf %73, %87 : vector<64x256xf32>
    %cst_32 = arith.constant 9.99999974E-6 : f32
    %89 = vector.broadcast %cst_32 : f32 to vector<64x1xf32>
    %90 = arith.addf %86, %89 : vector<64x1xf32>
    %91 = math.rsqrt %90 : vector<64x1xf32>
    %92 = vector.broadcast %91 : vector<64x1xf32> to vector<64x256xf32>
    %93 = arith.mulf %88, %92 : vector<64x256xf32>
    %94 = vector.broadcast %1 : vector<1x256xf32> to vector<64x256xf32>
    %95 = arith.mulf %93, %94 : vector<64x256xf32>
    %96 = vector.broadcast %2 : vector<1x256xf32> to vector<64x256xf32>
    %97 = arith.addf %95, %96 : vector<64x256xf32>
    %cst_33 = arith.constant 0.000000e+00 : f32
    %98 = vector.broadcast %cst_33 : f32 to vector<64x256xf32>
    %99 = arith.maximumf %97, %98 : vector<64x256xf32>
    %100 = arith.truncf %99 : vector<64x256xf32> to vector<64x256xbf16>
    %c0_34 = arith.constant 0 : index
    %c0_35 = arith.constant 0 : index
    %101 = vector.load %arg3[%c0_34, %c0_35] : memref<256x256xbf16, #tpu.memory_space<vmem>>, vector<256x256xbf16>
    %cst_36 = arith.constant dense<0.000000e+00> : vector<64x256xf32>
    %102 = tpu.matmul %100, %101, %cst_36 {dimension_numbers = #tpu.dot_dimension_numbers<[1], [0], [0], [1], [0, 0, 1, 1], [], []>} : vector<64x256xbf16>, vector<256x256xbf16>, vector<64x256xf32> -> vector<64x256xf32>
    %103 = vector.broadcast %3 : vector<1x256xf32> to vector<64x256xf32>
    %104 = arith.addf %102, %103 : vector<64x256xf32>
    %cst_37 = arith.constant dense<0.000000e+00> : vector<64xf32>
    %105 = vector.multi_reduction <add>, %104, %cst_37 [1] : vector<64x256xf32> to vector<64xf32>
    %106 = vector.shape_cast %105 : vector<64xf32> to vector<64x1xf32>
    %107 = arith.mulf %104, %104 : vector<64x256xf32>
    %cst_38 = arith.constant dense<0.000000e+00> : vector<64xf32>
    %108 = vector.multi_reduction <add>, %107, %cst_38 [1] : vector<64x256xf32> to vector<64xf32>
    %109 = vector.shape_cast %108 : vector<64xf32> to vector<64x1xf32>
    %cst_39 = arith.constant 3.906250e-03 : f32
    %110 = vector.broadcast %cst_39 : f32 to vector<64x1xf32>
    %111 = arith.mulf %106, %110 : vector<64x1xf32>
    %cst_40 = arith.constant 3.906250e-03 : f32
    %112 = vector.broadcast %cst_40 : f32 to vector<64x1xf32>
    %113 = arith.mulf %109, %112 : vector<64x1xf32>
    %114 = arith.mulf %111, %111 : vector<64x1xf32>
    %115 = arith.subf %113, %114 : vector<64x1xf32>
    %cst_41 = arith.constant 0.000000e+00 : f32
    %116 = vector.broadcast %cst_41 : f32 to vector<64x1xf32>
    %117 = arith.maximumf %115, %116 : vector<64x1xf32>
    %118 = vector.broadcast %111 : vector<64x1xf32> to vector<64x256xf32>
    %119 = arith.subf %104, %118 : vector<64x256xf32>
    %cst_42 = arith.constant 9.99999974E-6 : f32
    %120 = vector.broadcast %cst_42 : f32 to vector<64x1xf32>
    %121 = arith.addf %117, %120 : vector<64x1xf32>
    %122 = math.rsqrt %121 : vector<64x1xf32>
    %123 = vector.broadcast %122 : vector<64x1xf32> to vector<64x256xf32>
    %124 = arith.mulf %119, %123 : vector<64x256xf32>
    %125 = vector.broadcast %4 : vector<1x256xf32> to vector<64x256xf32>
    %126 = arith.mulf %124, %125 : vector<64x256xf32>
    %127 = vector.broadcast %5 : vector<1x256xf32> to vector<64x256xf32>
    %128 = arith.addf %126, %127 : vector<64x256xf32>
    %cst_43 = arith.constant 0.000000e+00 : f32
    %129 = vector.broadcast %cst_43 : f32 to vector<64x256xf32>
    %130 = arith.maximumf %128, %129 : vector<64x256xf32>
    %131 = arith.truncf %130 : vector<64x256xf32> to vector<64x256xbf16>
    %c0_44 = arith.constant 0 : index
    %c0_45 = arith.constant 0 : index
    %132 = vector.load %arg4[%c0_44, %c0_45] : memref<256x256xbf16, #tpu.memory_space<vmem>>, vector<256x256xbf16>
    %cst_46 = arith.constant dense<0.000000e+00> : vector<64x256xf32>
    %133 = tpu.matmul %131, %132, %cst_46 {dimension_numbers = #tpu.dot_dimension_numbers<[1], [0], [0], [1], [0, 0, 1, 1], [], []>} : vector<64x256xbf16>, vector<256x256xbf16>, vector<64x256xf32> -> vector<64x256xf32>
    %134 = vector.broadcast %6 : vector<1x256xf32> to vector<64x256xf32>
    %135 = arith.addf %133, %134 : vector<64x256xf32>
    %c64_47 = arith.constant 64 : index
    %c0_48 = arith.constant 0 : index
    %136 = vector.load %arg1[%c64_47, %c0_48] : memref<128x256xf32, #tpu.memory_space<vmem>>, vector<64x256xf32>
    %137 = arith.addf %135, %136 : vector<64x256xf32>
    %c64_49 = arith.constant 64 : index
    %c0_50 = arith.constant 0 : index
    %138 = vector.load %arg5[%c64_49, %c0_50] : memref<128x256xf32, #tpu.memory_space<vmem>>, vector<64x256xf32>
    tpu.vector_store %arg5[%c64_49, %c0_50], %137 {strides = array<i32>} : memref<128x256xf32, #tpu.memory_space<vmem>>, vector<64x256xf32>,
    return
  }
  func.func @transform_0(%arg0: i32) -> (i32, i32) {
    %c0_i32 = arith.constant 0 : i32
    %c0_i32_0 = arith.constant 0 : i32
    return %arg0, %c0_i32 : i32, i32
  }
  func.func @transform_1(%arg0: i32) -> (i32, i32) {
    %c0_i32 = arith.constant 0 : i32
    %c0_i32_0 = arith.constant 0 : i32
    %c0_i32_1 = arith.constant 0 : i32
    return %c0_i32, %c0_i32_0 : i32, i32
  }
  func.func @transform_2(%arg0: i32) -> (i32, i32) {
    %c0_i32 = arith.constant 0 : i32
    %c0_i32_0 = arith.constant 0 : i32
    %c0_i32_1 = arith.constant 0 : i32
    return %c0_i32, %c0_i32_0 : i32, i32
  }
  func.func @transform_3(%arg0: i32) -> (i32, i32) {
    %c0_i32 = arith.constant 0 : i32
    %c0_i32_0 = arith.constant 0 : i32
    %c0_i32_1 = arith.constant 0 : i32
    return %c0_i32, %c0_i32_0 : i32, i32
  }
  func.func @transform_4(%arg0: i32) -> (i32, i32) {
    %c0_i32 = arith.constant 0 : i32
    %c0_i32_0 = arith.constant 0 : i32
    return %arg0, %c0_i32 : i32, i32
  }
}

</mosaic_0001>

<llo_original>
// kernel: tpu_custom_call.1
$region0: #{tpu_custom_call.1}
  #allocation0 [shape = 'u32[]', space=smem, size = 0x4, offset = 0x4, fixed_abs, tag = 'smem constant byte address 0x4 - core index']
  #allocation1 [shape = 'u32[144,128]{1,0:T(1,128)}', space=vmem, size = 0x12000, scoped, tag = 'internal scratch']
  %s0 = inlined_call_operand.hbm [shape: f32[512,256], index: 0, kind: input, shape index: {}]
  %s1 = inlined_call_operand.hbm [shape: f32[8,256], index: 1, kind: input, shape index: {}]
  %s2 = inlined_call_operand.hbm [shape: bf16[256,256], index: 2, kind: input, shape index: {}]
  %s3 = inlined_call_operand.hbm [shape: bf16[256,256], index: 3, kind: input, shape index: {}]
  %s4 = inlined_call_operand.hbm [shape: f32[512,256], index: 4, kind: output, shape index: {}]
  %s5 = sld [smem:[#allocation0]]
  $region65: #{tpu_custom_call.1} parent=0
    _
  %s7 = ssub.s32 1, %s5
  %s8 = scalar_select 0, %s7, %s5
  $region1: #{tpu_custom_call.1} parent=0
    #allocation2 [shape = 'u8[262144]{0}', space=vmem, size = 0x40000, scoped, tag = 'input window, operand 0']
    #allocation3 [shape = 's32[2]{0}', space=sflag, size = 0x8, scoped, tag = 'scoped memory for tpu_custom_call.1']
    #allocation4 [shape = 's32[2]{0}', space=sflag, size = 0x8, scoped, tag = 'scoped memory for tpu_custom_call.1']
    #allocation5 [shape = 'u8[8192]{0}', space=vmem, size = 0x2000, scoped, tag = 'input window, operand 1, single buffered']
    #allocation6 [shape = 's32[1]{0}', space=sflag, size = 0x4, scoped, tag = 'scoped memory for tpu_custom_call.1']
    #allocation7 [shape = 'u8[131072]{0}', space=vmem, size = 0x20000, scoped, tag = 'input window, operand 2, single buffered']
    #allocation8 [shape = 'u8[131072]{0}', space=vmem, size = 0x20000, scoped, tag = 'input window, operand 3, single buffered']
    #allocation9 [shape = 's32[1]{0}', space=sflag, size = 0x4, scoped, tag = 'scoped memory for tpu_custom_call.1']
    #allocation10 [shape = 'u8[262144]{0}', space=vmem, size = 0x40000, scoped, tag = 'output window, operand 0']
    %9 = vsyncpa [#allocation3], 0
    %s10 = scalar_lea.sflag [#allocation3], 1
    %11 = vsyncpa %s10, 0
    %12 = vsyncpa [#allocation6], 0
    %13 = vsyncpa [#allocation9], 0
    %14 = vsyncpa [#allocation4], 0
    %s15 = scalar_lea.sflag [#allocation4], 1
    %16 = vsyncpa %s15, 0
    loop: start=0, step=1, limit=6
    $region2: #{tpu_custom_call.1} parent=1 // loop_pre_header
      _
    $region3: #{tpu_custom_call.1} parent=1 // loop_header
      %s18 = sphi 0, %s22
      %p19 = scmp.ge.s32.totalorder %s18, 6
      %s28 = sphi 0, %s30
      %s31 = sphi 0, %s28
      %s32 = sphi 0, %s31
      %s48 = sphi 0, %s32
      %s52 = sphi 0, %s52
      %s54 = sphi 0, %s52
      %s55 = sphi 0, %s54
      %s69 = sphi 0, %s55
      %s73 = sphi 0, %s73
      %s75 = sphi 0, %s73
      %s76 = sphi 0, %s75
      %s90 = sphi 0, %s76
      %s94 = sphi 0, %s94
      %s96 = sphi 0, %s94
      %s97 = sphi 0, %s96
      %s111 = sphi 0, %s97
      %s117 = sphi 0, %s119
      %s120 = sphi 0, %s117
      %s121 = sphi 0, %s120
      %s137 = sphi 0, %s121
    $region4: #{tpu_custom_call.1} parent=1 // loop_header_branch
      %21 = sbr.rel (%p19) target = $region8
    $region5: #{tpu_custom_call.1} parent=1 // loop_body
      %s23 = ssub.s32 %s18, 1
      %s24 = ssub.s32 %s18, 2
      %s25 = sadd.s32 %s18, 1
      %s26 = ssub.s32 %s18, %s25
      %p27 = scmp.eq.s32.totalorder %s26, 0
      %s29 = sadd.s32 %s28, 1
      %s30 = scalar_select %p27, %s28, %s29
      %p33 = pneg %p27
      %p34 = scmp.eq.s32.totalorder %s18, 3
      %p35 = por %p33, %p34
      %p36 = scmp.ne.s32.totalorder %s28, %s31
      %p37 = scmp.eq.s32.totalorder %s18, 0
      %p38 = por %p36, %p37
      %p39 = scmp.ne.s32.totalorder %s28, %s31
      %p40 = scmp.eq.s32.totalorder %s23, 3
      %p41 = por %p39, %p40
      %p42 = scmp.ne.s32.totalorder %s31, %s32
      %p43 = scmp.eq.s32.totalorder %s23, 0
      %p44 = por %p42, %p43
      %p45 = scmp.ne.s32.totalorder %s31, %s32
      %p46 = scmp.eq.s32.totalorder %s24, 3
      %p47 = por %p45, %p46
      %p49 = scmp.ne.s32.totalorder %s32, %s48
      %p50 = scmp.eq.s32.totalorder %s24, 0
      %p51 = por %p49, %p50
      %s53 = sadd.s32 %s52, 1
      %p56 = scmp.eq.s32.totalorder %s18, 3
      %p57 = scmp.ne.s32.totalorder %s52, %s54
      %p58 = scmp.eq.s32.totalorder %s18, 0
      %p59 = por %p57, %p58
      %p60 = scmp.ne.s32.totalorder %s52, %s54
      %p61 = scmp.eq.s32.totalorder %s23, 3
      %p62 = por %p60, %p61
      %p63 = scmp.ne.s32.totalorder %s54, %s55
      %p64 = scmp.eq.s32.totalorder %s23, 0
      %p65 = por %p63, %p64
      %p66 = scmp.ne.s32.totalorder %s54, %s55
      %p67 = scmp.eq.s32.totalorder %s24, 3
      %p68 = por %p66, %p67
      %p70 = scmp.ne.s32.totalorder %s55, %s69
      %p71 = scmp.eq.s32.totalorder %s24, 0
      %p72 = por %p70, %p71
      %s74 = sadd.s32 %s73, 1
      %p77 = scmp.eq.s32.totalorder %s18, 3
      %p78 = scmp.ne.s32.totalorder %s73, %s75
      %p79 = scmp.eq.s32.totalorder %s18, 0
      %p80 = por %p78, %p79
      %p81 = scmp.ne.s32.totalorder %s73, %s75
      %p82 = scmp.eq.s32.totalorder %s23, 3
      %p83 = por %p81, %p82
      %p84 = scmp.ne.s32.totalorder %s75, %s76
      %p85 = scmp.eq.s32.totalorder %s23, 0
      %p86 = por %p84, %p85
      %p87 = scmp.ne.s32.totalorder %s75, %s76
      %p88 = scmp.eq.s32.totalorder %s24, 3
      %p89 = por %p87, %p88
      %p91 = scmp.ne.s32.totalorder %s76, %s90
      %p92 = scmp.eq.s32.totalorder %s24, 0
      %p93 = por %p91, %p92
      %s95 = sadd.s32 %s94, 1
      %p98 = scmp.eq.s32.totalorder %s18, 3
      %p99 = scmp.ne.s32.totalorder %s94, %s96
      %p100 = scmp.eq.s32.totalorder %s18, 0
      %p101 = por %p99, %p100
      %p102 = scmp.ne.s32.totalorder %s94, %s96
      %p103 = scmp.eq.s32.totalorder %s23, 3
      %p104 = por %p102, %p103
      %p105 = scmp.ne.s32.totalorder %s96, %s97
      %p106 = scmp.eq.s32.totalorder %s23, 0
      %p107 = por %p105, %p106
      %p108 = scmp.ne.s32.totalorder %s96, %s97
      %p109 = scmp.eq.s32.totalorder %s24, 3
      %p110 = por %p108, %p109
      %p112 = scmp.ne.s32.totalorder %s97, %s111
      %p113 = scmp.eq.s32.totalorder %s24, 0
      %p114 = por %p112, %p113
      %s115 = ssub.s32 %s18, %s25
      %p116 = scmp.eq.s32.totalorder %s115, 0
      %s118 = sadd.s32 %s117, 1
      %s119 = scalar_select %p116, %s117, %s118
      %p122 = pneg %p116
      %p123 = scmp.eq.s32.totalorder %s18, 3
      %p124 = por %p122, %p123
      %p125 = scmp.ne.s32.totalorder %s117, %s120
      %p126 = scmp.eq.s32.totalorder %s18, 0
      %p127 = por %p125, %p126
      %p128 = scmp.ne.s32.totalorder %s117, %s120
      %p129 = scmp.eq.s32.totalorder %s23, 3
      %p130 = por %p128, %p129
      %p131 = scmp.ne.s32.totalorder %s120, %s121
      %p132 = scmp.eq.s32.totalorder %s23, 0
      %p133 = por %p131, %p132
      %p134 = scmp.ne.s32.totalorder %s120, %s121
      %p135 = scmp.eq.s32.totalorder %s24, 3
      %p136 = por %p134, %p135
      %p138 = scmp.ne.s32.totalorder %s121, %s137
      %p139 = scmp.eq.s32.totalorder %s24, 0
      %p140 = por %p138, %p139
      %p141 = scmp.le.s32.totalorder 1, %s18
      %p142 = scmp.lt.s32.totalorder %s18, 5
      %p143 = pnand %p141, %p142
      %p144 = pneg %p143
      // Predicated region
      $region9: #{tpu_custom_call.1} parent=5 // pred_check
        _
      $region10: #{tpu_custom_call.1} parent=5 // pred_check_branch
        %146 = sbr.rel (%p143) target = $region12
      $region11: #{tpu_custom_call.1} parent=5 // pred_region
        %s147 = ssub.s32 %s18, 1
        // Predicated region
        $region13: #{tpu_custom_call.1} parent=11 // pred_check
          %p148 = pneg %p65
        $region14: #{tpu_custom_call.1} parent=11 // pred_check_branch
          %150 = sbr.rel (%p148) target = $region16
        $region15: #{tpu_custom_call.1} parent=11 // pred_region
          %s152 = ssub.s32 256, 256
          %153 = vsyncadd [#allocation6], %s152
          %s155 = sshll.u32 [#allocation5], 4
          %s156 = int_to_ptr.vmem [resolvable:$true] %s155
          %158 = dma.hbm_to_vmem [thread:$0]  %s1, 256, %s156, [#allocation6]
        $region16: #{tpu_custom_call.1} parent=11 // pred_fallthru
          _
        // Predicated region
        $region17: #{tpu_custom_call.1} parent=11 // pred_check
          %p159 = pneg %p86
        $region18: #{tpu_custom_call.1} parent=11 // pred_check_branch
          %161 = sbr.rel (%p159) target = $region20
        $region19: #{tpu_custom_call.1} parent=11 // pred_region
          %s163 = ssub.s32 4096, 4096
          %164 = vsyncadd [#allocation6], %s163
          %s165 = sshll.u32 [#allocation7], 4
          %s166 = int_to_ptr.vmem [resolvable:$true] %s165
          %171 = dma.hbm_to_vmem [thread:$0]  %s2, 4096, %s166, [#allocation6], 128, 128, 8
        $region20: #{tpu_custom_call.1} parent=11 // pred_fallthru
          _
        // Predicated region
        $region21: #{tpu_custom_call.1} parent=11 // pred_check
          %p172 = pneg %p107
        $region22: #{tpu_custom_call.1} parent=11 // pred_check_branch
          %174 = sbr.rel (%p172) target = $region24
        $region23: #{tpu_custom_call.1} parent=11 // pred_region
          %s176 = ssub.s32 4096, 4096
          %177 = vsyncadd [#allocation9], %s176
          %s178 = sshll.u32 [#allocation8], 4
          %s179 = int_to_ptr.vmem [resolvable:$true] %s178
          %184 = dma.hbm_to_vmem [thread:$0]  %s3, 4096, %s179, [#allocation9], 128, 128, 8
        $region24: #{tpu_custom_call.1} parent=11 // pred_fallthru
          _
      $region12: #{tpu_custom_call.1} parent=5 // pred_fallthru
        _
      %p185 = scmp.lt.s32.totalorder %s18, 4
      // Predicated region
      $region25: #{tpu_custom_call.1} parent=5 // pred_check
        %p186 = pneg %p185
      $region26: #{tpu_custom_call.1} parent=5 // pred_check_branch
        %188 = sbr.rel (%p186) target = $region28
      $region27: #{tpu_custom_call.1} parent=5 // pred_region
        // Predicated region
        $region29: #{tpu_custom_call.1} parent=27 // pred_check
          %p189 = pneg %p38
        $region30: #{tpu_custom_call.1} parent=27 // pred_check_branch
          %191 = sbr.rel (%p189) target = $region32
        $region31: #{tpu_custom_call.1} parent=27 // pred_region
          %s192 = sand.u32 %s28, 1
          %s193 = scalar_lea.sflag [#allocation3], %s192
          %s194 = sand.u32 %s28, 1
          %s195 = smul.addr %s194, 256
          %s196 = scalar_lea.vmem [#allocation2], %s195
          %s197 = smul.u32 16, %s18
          %s199 = ssub.s32 4096, 4096
          %200 = vsyncadd %s193, %s199
          %s201 = smul.addr %s197, 2
          %s202 = smul.addr %s201, 128
          %s203 = scalar_lea.hbm %s0, %s202
          %s204 = sshll.u32 %s196, 4
          %s205 = int_to_ptr.vmem [resolvable:$true] %s204
          %210 = dma.hbm_to_vmem [thread:$0]  %s203, 4096, %s205, %s193, 256, 256, 16
        $region32: #{tpu_custom_call.1} parent=27 // pred_fallthru
          _
      $region28: #{tpu_custom_call.1} parent=5 // pred_fallthru
        _
      %p211 = scmp.le.s32.totalorder 1, %s18
      %p212 = scmp.lt.s32.totalorder %s18, 5
      %p213 = pnand %p211, %p212
      %p214 = pneg %p213
      // Predicated region
      $region33: #{tpu_custom_call.1} parent=5 // pred_check
        _
      $region34: #{tpu_custom_call.1} parent=5 // pred_check_branch
        %216 = sbr.rel (%p213) target = $region36
      $region35: #{tpu_custom_call.1} parent=5 // pred_region
        %s217 = ssub.s32 %s18, 1
        %s218 = sand.u32 %s31, 1
        %s219 = scalar_lea.sflag [#allocation3], %s218
        %s220 = sand.u32 %s31, 1
        %s221 = smul.addr %s220, 256
        %s222 = scalar_lea.vmem [#allocation2], %s221
        // Predicated region
        $region37: #{tpu_custom_call.1} parent=35 // pred_check
          %p223 = pneg %p44
        $region38: #{tpu_custom_call.1} parent=35 // pred_check_branch
          %225 = sbr.rel (%p223) target = $region40
        $region39: #{tpu_custom_call.1} parent=35 // pred_region
          %226 = dma.done %s219, 4096
        $region40: #{tpu_custom_call.1} parent=35 // pred_fallthru
          _
        // Predicated region
        $region41: #{tpu_custom_call.1} parent=35 // pred_check
          %p227 = pneg %p65
        $region42: #{tpu_custom_call.1} parent=35 // pred_check_branch
          %229 = sbr.rel (%p227) target = $region44
        $region43: #{tpu_custom_call.1} parent=35 // pred_region
          %230 = dma.done [#allocation6], 256
        $region44: #{tpu_custom_call.1} parent=35 // pred_fallthru
          _
        // Predicated region
        $region45: #{tpu_custom_call.1} parent=35 // pred_check
          %p231 = pneg %p86
        $region46: #{tpu_custom_call.1} parent=35 // pred_check_branch
          %233 = sbr.rel (%p231) target = $region48
        $region47: #{tpu_custom_call.1} parent=35 // pred_region
          %234 = dma.done [#allocation6], 4096
        $region48: #{tpu_custom_call.1} parent=35 // pred_fallthru
          _
        // Predicated region
        $region49: #{tpu_custom_call.1} parent=35 // pred_check
          %p235 = pneg %p107
        $region50: #{tpu_custom_call.1} parent=35 // pred_check_branch
          %237 = sbr.rel (%p235) target = $region52
        $region51: #{tpu_custom_call.1} parent=35 // pred_region
          %238 = dma.done [#allocation9], 4096
        $region52: #{tpu_custom_call.1} parent=35 // pred_fallthru
          _
        %s239 = sand.u32 %s31, 1
        %s240 = scalar_lea.sflag [#allocation3], %s239
        %s241 = sand.u32 %s31, 1
        %s242 = smul.addr %s241, 256
        %s243 = scalar_lea.vmem [#allocation2], %s242
        %p244 = pneg %p44
        %p245 = pneg %p41
        %p246 = pneg %p65
        %p247 = pneg %p62
        %p248 = pneg %p86
        %p249 = pneg %p83
        %p250 = pneg %p107
        %p251 = pneg %p104
        %p252 = pneg %p133
        %p253 = pneg %p130
        %s254 = sand.u32 %s120, 1
        %s255 = scalar_lea.sflag [#allocation4], %s254
        %s256 = sand.u32 %s120, 1
        %s257 = smul.addr %s256, 256
        %s258 = scalar_lea.vmem [#allocation10], %s257
        %s259 = smul.u32 16, %s23
        %s260 = smul.u32 16, %s23
        %v261 = vld [vmem:[#allocation5] sm:$0xff]
        %v262 = vld [vmem:[#allocation5 + $0x8] sm:$0xff]
        %v263 = vld [vmem:[%s222] sm:$0xff]
        %v264 = vld [vmem:[%s222 + $0x8] sm:$0xff]
        %v265 = vld [vmem:[%s222 + $0x10] sm:$0xff]
        %v266 = vld [vmem:[%s222 + $0x18] sm:$0xff]
        %v267 = vld [vmem:[%s222 + $0x20] sm:$0xff]
        %v268 = vld [vmem:[%s222 + $0x28] sm:$0xff]
        %v269 = vld [vmem:[%s222 + $0x30] sm:$0xff]
        %v270 = vld [vmem:[%s222 + $0x38] sm:$0xff]
        %v271 = vld [vmem:[%s222 + $0x40] sm:$0xff]
        %v272 = vld [vmem:[%s222 + $0x48] sm:$0xff]
        %v273 = vld [vmem:[%s222 + $0x50] sm:$0xff]
        %v274 = vld [vmem:[%s222 + $0x58] sm:$0xff]
        %v275 = vld [vmem:[%s222 + $0x60] sm:$0xff]
        %v276 = vld [vmem:[%s222 + $0x68] sm:$0xff]
        %v277 = vld [vmem:[%s222 + $0x70] sm:$0xff]
        %v278 = vld [vmem:[%s222 + $0x78] sm:$0xff]
        %v279 = vadd.f32 %v263, %v264
        %280 = vadd.xlane.f32.xlu0 %v279
        %v281 = vpop.xlane.xlu0 %280
        %v282 = vadd.f32 %v265, %v266
        %283 = vadd.xlane.f32.xlu0 %v282
        %v284 = vpop.xlane.xlu0 %283
        %v285 = vadd.f32 %v267, %v268
        %286 = vadd.xlane.f32.xlu0 %v285
        %v287 = vpop.xlane.xlu0 %286
        %v288 = vadd.f32 %v269, %v270
        %289 = vadd.xlane.f32.xlu0 %v288
        %v290 = vpop.xlane.xlu0 %289
        %v291 = vadd.f32 %v271, %v272
        %292 = vadd.xlane.f32.xlu0 %v291
        %v293 = vpop.xlane.xlu0 %292
        %v294 = vadd.f32 %v273, %v274
        %295 = vadd.xlane.f32.xlu0 %v294
        %v296 = vpop.xlane.xlu0 %295
        %v297 = vadd.f32 %v275, %v276
        %298 = vadd.xlane.f32.xlu0 %v297
        %v299 = vpop.xlane.xlu0 %298
        %v300 = vadd.f32 %v277, %v278
        %301 = vadd.xlane.f32.xlu0 %v300
        %v302 = vpop.xlane.xlu0 %301
        %v303 = vmul.f32 %v263, %v263
        %v304 = vmul.f32 %v264, %v264
        %v305 = vmul.f32 %v265, %v265
        %v306 = vmul.f32 %v266, %v266
        %v307 = vmul.f32 %v267, %v267
        %v308 = vmul.f32 %v268, %v268
        %v309 = vmul.f32 %v269, %v269
        %v310 = vmul.f32 %v270, %v270
        %v311 = vmul.f32 %v271, %v271
        %v312 = vmul.f32 %v272, %v272
        %v313 = vmul.f32 %v273, %v273
        %v314 = vmul.f32 %v274, %v274
        %v315 = vmul.f32 %v275, %v275
        %v316 = vmul.f32 %v276, %v276
        %v317 = vmul.f32 %v277, %v277
        %v318 = vmul.f32 %v278, %v278
        %v319 = vadd.f32 %v303, %v304
        %320 = vadd.xlane.f32.xlu0 %v319
        %v321 = vpop.xlane.xlu0 %320
        %v322 = vadd.f32 %v305, %v306
        %323 = vadd.xlane.f32.xlu0 %v322
        %v324 = vpop.xlane.xlu0 %323
        %v325 = vadd.f32 %v307, %v308
        %326 = vadd.xlane.f32.xlu0 %v325
        %v327 = vpop.xlane.xlu0 %326
        %v328 = vadd.f32 %v309, %v310
        %329 = vadd.xlane.f32.xlu0 %v328
        %v330 = vpop.xlane.xlu0 %329
        %v331 = vadd.f32 %v311, %v312
        %332 = vadd.xlane.f32.xlu0 %v331
        %v333 = vpop.xlane.xlu0 %332
        %v334 = vadd.f32 %v313, %v314
        %335 = vadd.xlane.f32.xlu0 %v334
        %v336 = vpop.xlane.xlu0 %335
        %v337 = vadd.f32 %v315, %v316
        %338 = vadd.xlane.f32.xlu0 %v337
        %v339 = vpop.xlane.xlu0 %338
        %v340 = vadd.f32 %v317, %v318
        %341 = vadd.xlane.f32.xlu0 %v340
        %v342 = vpop.xlane.xlu0 %341
        %v343 = vmul.f32 %v281, 0.00390625
        %v344 = vmul.f32 %v284, 0.00390625
        %v345 = vmul.f32 %v287, 0.00390625
        %v346 = vmul.f32 %v290, 0.00390625
        %v347 = vmul.f32 %v293, 0.00390625
        %v348 = vmul.f32 %v296, 0.00390625
        %v349 = vmul.f32 %v299, 0.00390625
        %v350 = vmul.f32 %v302, 0.00390625
        %v351 = vmul.f32 %v321, 0.00390625
        %v352 = vmul.f32 %v324, 0.00390625
        %v353 = vmul.f32 %v327, 0.00390625
        %v354 = vmul.f32 %v330, 0.00390625
        %v355 = vmul.f32 %v333, 0.00390625
        %v356 = vmul.f32 %v336, 0.00390625
        %v357 = vmul.f32 %v339, 0.00390625
        %v358 = vmul.f32 %v342, 0.00390625
        %v359 = vmul.f32 %v343, %v343
        %v360 = vmul.f32 %v344, %v344
        %v361 = vmul.f32 %v345, %v345
        %v362 = vmul.f32 %v346, %v346
        %v363 = vmul.f32 %v347, %v347
        %v364 = vmul.f32 %v348, %v348
        %v365 = vmul.f32 %v349, %v349
        %v366 = vmul.f32 %v350, %v350
        %v367 = vsub.f32 %v351, %v359
        %v368 = vsub.f32 %v352, %v360
        %v369 = vsub.f32 %v353, %v361
        %v370 = vsub.f32 %v354, %v362
        %v371 = vsub.f32 %v355, %v363
        %v372 = vsub.f32 %v356, %v364
        %v373 = vsub.f32 %v357, %v365
        %v374 = vsub.f32 %v358, %v366
        %v375 = vmax.f32 %v367, 0.0
        %v376 = vmax.f32 %v368, 0.0
        %v377 = vmax.f32 %v369, 0.0
        %v378 = vmax.f32 %v370, 0.0
        %v379 = vmax.f32 %v371, 0.0
        %v380 = vmax.f32 %v372, 0.0
        %v381 = vmax.f32 %v373, 0.0
        %v382 = vmax.f32 %v374, 0.0
        %v383 = vsub.f32 %v263, %v343
        %v384 = vsub.f32 %v264, %v343
        %v385 = vsub.f32 %v265, %v344
        %v386 = vsub.f32 %v266, %v344
        %v387 = vsub.f32 %v267, %v345
        %v388 = vsub.f32 %v268, %v345
        %v389 = vsub.f32 %v269, %v346
        %v390 = vsub.f32 %v270, %v346
        %v391 = vsub.f32 %v271, %v347
        %v392 = vsub.f32 %v272, %v347
        %v393 = vsub.f32 %v273, %v348
        %v394 = vsub.f32 %v274, %v348
        %v395 = vsub.f32 %v275, %v349
        %v396 = vsub.f32 %v276, %v349
        %v397 = vsub.f32 %v277, %v350
        %v398 = vsub.f32 %v278, %v350
        %v399 = vadd.f32 %v375, 1e-05
        %v400 = vadd.f32 %v376, 1e-05
        %v401 = vadd.f32 %v377, 1e-05
        %v402 = vadd.f32 %v378, 1e-05
        %v403 = vadd.f32 %v379, 1e-05
        %v404 = vadd.f32 %v380, 1e-05
        %v405 = vadd.f32 %v381, 1e-05
        %v406 = vadd.f32 %v382, 1e-05
        %v407 = vrsqrt.pop %v399
        %v408 = vrsqrt.pop %v400
        %v409 = vrsqrt.pop %v401
        %v410 = vrsqrt.pop %v402
        %v411 = vrsqrt.pop %v403
        %v412 = vrsqrt.pop %v404
        %v413 = vrsqrt.pop %v405
        %v414 = vrsqrt.pop %v406
        %v415 = vmul.f32 %v383, %v407
        %v416 = vmul.f32 %v384, %v407
        %v417 = vmul.f32 %v385, %v408
        %v418 = vmul.f32 %v386, %v408
        %v419 = vmul.f32 %v387, %v409
        %v420 = vmul.f32 %v388, %v409
        %v421 = vmul.f32 %v389, %v410
        %v422 = vmul.f32 %v390, %v410
        %v423 = vmul.f32 %v391, %v411
        %v424 = vmul.f32 %v392, %v411
        %v425 = vmul.f32 %v393, %v412
        %v426 = vmul.f32 %v394, %v412
        %v427 = vmul.f32 %v395, %v413
        %v428 = vmul.f32 %v396, %v413
        %v429 = vmul.f32 %v397, %v414
        %v430 = vmul.f32 %v398, %v414
        %v431 = vlaneseq
        %v432 = vshrl.u32 %v431, 7
        %v433 = vsub.s32 0, %v432
        %v434 = vrot.slane %v261, %v433
        %v435 = vlaneseq
        %v436 = vshrl.u32 %v435, 7
        %v437 = vsub.s32 0, %v436
        %v438 = vrot.slane %v262, %v437
        %v439 = vmul.f32 %v415, %v434
        %v440 = vmul.f32 %v416, %v438
        %v441 = vmul.f32 %v417, %v434
        %v442 = vmul.f32 %v418, %v438
        %v443 = vmul.f32 %v419, %v434
        %v444 = vmul.f32 %v420, %v438
        %v445 = vmul.f32 %v421, %v434
        %v446 = vmul.f32 %v422, %v438
        %v447 = vmul.f32 %v423, %v434
        %v448 = vmul.f32 %v424, %v438
        %v449 = vmul.f32 %v425, %v434
        %v450 = vmul.f32 %v426, %v438
        %v451 = vmul.f32 %v427, %v434
        %v452 = vmul.f32 %v428, %v438
        %v453 = vmul.f32 %v429, %v434
        %v454 = vmul.f32 %v430, %v438
        %v455 = vlaneseq
        %v456 = vshrl.u32 %v455, 7
        %v457 = vsub.s32 1, %v456
        %v458 = vrot.slane %v261, %v457
        %v459 = vlaneseq
        %v460 = vshrl.u32 %v459, 7
        %v461 = vsub.s32 1, %v460
        %v462 = vrot.slane %v262, %v461
        %v463 = vadd.f32 %v439, %v458
        %v464 = vadd.f32 %v440, %v462
        %v465 = vadd.f32 %v441, %v458
        %v466 = vadd.f32 %v442, %v462
        %v467 = vadd.f32 %v443, %v458
        %v468 = vadd.f32 %v444, %v462
        %v469 = vadd.f32 %v445, %v458
        %v470 = vadd.f32 %v446, %v462
        %v471 = vadd.f32 %v447, %v458
        %v472 = vadd.f32 %v448, %v462
        %v473 = vadd.f32 %v449, %v458
        %v474 = vadd.f32 %v450, %v462
        %v475 = vadd.f32 %v451, %v458
        %v476 = vadd.f32 %v452, %v462
        %v477 = vadd.f32 %v453, %v458
        %v478 = vadd.f32 %v454, %v462
        %v479 = vmax.f32 %v463, 0.0
        %v480 = vmax.f32 %v464, 0.0
        %v481 = vmax.f32 %v465, 0.0
        %v482 = vmax.f32 %v466, 0.0
        %v483 = vmax.f32 %v467, 0.0
        %v484 = vmax.f32 %v468, 0.0
        %v485 = vmax.f32 %v469, 0.0
        %v486 = vmax.f32 %v470, 0.0
        %v487 = vmax.f32 %v471, 0.0
        %v488 = vmax.f32 %v472, 0.0
        %v489 = vmax.f32 %v473, 0.0
        %v490 = vmax.f32 %v474, 0.0
        %v491 = vmax.f32 %v475, 0.0
        %v492 = vmax.f32 %v476, 0.0
        %v493 = vmax.f32 %v477, 0.0
        %v494 = vmax.f32 %v478, 0.0
        %v495 = vpack.c.bf16 %v481, %v479
        %v496 = vpack.c.bf16 %v482, %v480
        %v497 = vpack.c.bf16 %v485, %v483
        %v498 = vpack.c.bf16 %v486, %v484
        %v499 = vpack.c.bf16 %v489, %v487
        %v500 = vpack.c.bf16 %v490, %v488
        %v501 = vpack.c.bf16 %v493, %v491
        %v502 = vpack.c.bf16 %v494, %v492
        %v503 = vld [vmem:[#allocation7] sm:$0xff]
        %v504 = vld [vmem:[#allocation7 + $0x8] sm:$0xff]
        %v505 = vld [vmem:[#allocation7 + $0x10] sm:$0xff]
        %v506 = vld [vmem:[#allocation7 + $0x18] sm:$0xff]
        %v507 = vld [vmem:[#allocation7 + $0x20] sm:$0xff]
        %v508 = vld [vmem:[#allocation7 + $0x28] sm:$0xff]
        %v509 = vld [vmem:[#allocation7 + $0x30] sm:$0xff]
        %v510 = vld [vmem:[#allocation7 + $0x38] sm:$0xff]
        %v511 = vld [vmem:[#allocation7 + $0x40] sm:$0xff]
        %v512 = vld [vmem:[#allocation7 + $0x48] sm:$0xff]
        %v513 = vld [vmem:[#allocation7 + $0x50] sm:$0xff]
        %v514 = vld [vmem:[#allocation7 + $0x58] sm:$0xff]
        %v515 = vld [vmem:[#allocation7 + $0x60] sm:$0xff]
        %v516 = vld [vmem:[#allocation7 + $0x68] sm:$0xff]
        %v517 = vld [vmem:[#allocation7 + $0x70] sm:$0xff]
        %v518 = vld [vmem:[#allocation7 + $0x78] sm:$0xff]
        %v519 = vld [vmem:[#allocation7 + $0x80] sm:$0xff]
        %v520 = vld [vmem:[#allocation7 + $0x88] sm:$0xff]
        %v521 = vld [vmem:[#allocation7 + $0x90] sm:$0xff]
        %v522 = vld [vmem:[#allocation7 + $0x98] sm:$0xff]
        %v523 = vld [vmem:[#allocation7 + $0xa0] sm:$0xff]
        %v524 = vld [vmem:[#allocation7 + $0xa8] sm:$0xff]
        %v525 = vld [vmem:[#allocation7 + $0xb0] sm:$0xff]
        %v526 = vld [vmem:[#allocation7 + $0xb8] sm:$0xff]
        %v527 = vld [vmem:[#allocation7 + $0xc0] sm:$0xff]
        %v528 = vld [vmem:[#allocation7 + $0xc8] sm:$0xff]
        %v529 = vld [vmem:[#allocation7 + $0xd0] sm:$0xff]
        %v530 = vld [vmem:[#allocation7 + $0xd8] sm:$0xff]
        %v531 = vld [vmem:[#allocation7 + $0xe0] sm:$0xff]
        %v532 = vld [vmem:[#allocation7 + $0xe8] sm:$0xff]
        %v533 = vld [vmem:[#allocation7 + $0xf0] sm:$0xff]
        %v534 = vld [vmem:[#allocation7 + $0xf8] sm:$0xff]
        %v535 = vlaneseq
        %v536 = vshrl.u32 %v535, 7
        %v537 = vsub.s32 2, %v536
        %v538 = vrot.slane %v261, %v537
        %v539 = vlaneseq
        %v540 = vshrl.u32 %v539, 7
        %v541 = vsub.s32 2, %v540
        %v542 = vrot.slane %v262, %v541
        %v575 = vunpack.c.l.b16 %v503
        %v576 = vunpack.c.h.b16 %v503
        %v577 = vunpack.c.l.b16 %v504
        %v578 = vunpack.c.h.b16 %v504
        %v579 = vunpack.c.l.b16 %v505
        %v580 = vunpack.c.h.b16 %v505
        %v581 = vunpack.c.l.b16 %v506
        %v582 = vunpack.c.h.b16 %v506
        %v583 = vunpack.c.l.b16 %v507
        %v584 = vunpack.c.h.b16 %v507
        %v585 = vunpack.c.l.b16 %v508
        %v586 = vunpack.c.h.b16 %v508
        %v587 = vunpack.c.l.b16 %v509
        %v588 = vunpack.c.h.b16 %v509
        %v589 = vunpack.c.l.b16 %v510
        %v590 = vunpack.c.h.b16 %v510
        %v591 = vunpack.c.l.b16 %v511
        %v592 = vunpack.c.h.b16 %v511
        %v593 = vunpack.c.l.b16 %v512
        %v594 = vunpack.c.h.b16 %v512
        %v595 = vunpack.c.l.b16 %v513
        %v596 = vunpack.c.h.b16 %v513
        %v597 = vunpack.c.l.b16 %v514
        %v598 = vunpack.c.h.b16 %v514
        %v599 = vunpack.c.l.b16 %v515
        %v600 = vunpack.c.h.b16 %v515
        %v601 = vunpack.c.l.b16 %v516
        %v602 = vunpack.c.h.b16 %v516
        %v603 = vunpack.c.l.b16 %v517
        %v604 = vunpack.c.h.b16 %v517
        %v605 = vunpack.c.l.b16 %v518
        %v606 = vunpack.c.h.b16 %v518
        %v607 = vunpack.c.l.b16 %v519
        %v608 = vunpack.c.h.b16 %v519
        %v609 = vunpack.c.l.b16 %v520
        %v610 = vunpack.c.h.b16 %v520
        %v611 = vunpack.c.l.b16 %v521
        %v612 = vunpack.c.h.b16 %v521
        %v613 = vunpack.c.l.b16 %v522
        %v614 = vunpack.c.h.b16 %v522
        %v615 = vunpack.c.l.b16 %v523
        %v616 = vunpack.c.h.b16 %v523
        %v617 = vunpack.c.l.b16 %v524
        %v618 = vunpack.c.h.b16 %v524
        %v619 = vunpack.c.l.b16 %v525
        %v620 = vunpack.c.h.b16 %v525
        %v621 = vunpack.c.l.b16 %v526
        %v622 = vunpack.c.h.b16 %v526
        %v623 = vunpack.c.l.b16 %v527
        %v624 = vunpack.c.h.b16 %v527
        %v625 = vunpack.c.l.b16 %v528
        %v626 = vunpack.c.h.b16 %v528
        %v627 = vunpack.c.l.b16 %v529
        %v628 = vunpack.c.h.b16 %v529
        %v629 = vunpack.c.l.b16 %v530
        %v630 = vunpack.c.h.b16 %v530
        %v631 = vunpack.c.l.b16 %v531
        %v632 = vunpack.c.h.b16 %v531
        %v633 = vunpack.c.l.b16 %v532
        %v634 = vunpack.c.h.b16 %v532
        %v635 = vunpack.c.l.b16 %v533
        %v636 = vunpack.c.h.b16 %v533
        %v637 = vunpack.c.l.b16 %v534
        %v638 = vunpack.c.h.b16 %v534
        %v639 = vpack.c.b16 %v577, %v575
        %v640 = vpack.c.b16 %v578, %v576
        %v641 = vpack.c.b16 %v581, %v579
        %v642 = vpack.c.b16 %v582, %v580
        %v643 = vpack.c.b16 %v585, %v583
        %v644 = vpack.c.b16 %v586, %v584
        %v645 = vpack.c.b16 %v589, %v587
        %v646 = vpack.c.b16 %v590, %v588
        %v647 = vpack.c.b16 %v593, %v591
        %v648 = vpack.c.b16 %v594, %v592
        %v649 = vpack.c.b16 %v597, %v595
        %v650 = vpack.c.b16 %v598, %v596
        %v651 = vpack.c.b16 %v601, %v599
        %v652 = vpack.c.b16 %v602, %v600
        %v653 = vpack.c.b16 %v605, %v603
        %v654 = vpack.c.b16 %v606, %v604
        %v655 = vpack.c.b16 %v609, %v607
        %v656 = vpack.c.b16 %v610, %v608
        %v657 = vpack.c.b16 %v613, %v611
        %v658 = vpack.c.b16 %v614, %v612
        %v659 = vpack.c.b16 %v617, %v615
        %v660 = vpack.c.b16 %v618, %v616
        %v661 = vpack.c.b16 %v621, %v619
        %v662 = vpack.c.b16 %v622, %v620
        %v663 = vpack.c.b16 %v625, %v623
        %v664 = vpack.c.b16 %v626, %v624
        %v665 = vpack.c.b16 %v629, %v627
        %v666 = vpack.c.b16 %v630, %v628
        %v667 = vpack.c.b16 %v633, %v631
        %v668 = vpack.c.b16 %v634, %v632
        %v669 = vpack.c.b16 %v637, %v635
        %v670 = vpack.c.b16 %v638, %v636
        %703 = vmatprep.subr.bf16.mxu0 %v654
        %704 = vmatpush1.bf16.msra.mxu0 %v653
        %705 = vmatprep.subr.bf16.mxu0 %v652
        %706 = vmatpush1.bf16.msra.mxu0 %v651
        %707 = vmatprep.subr.bf16.mxu0 %v650
        %708 = vmatpush1.bf16.msra.mxu0 %v649
        %709 = vmatprep.subr.bf16.mxu0 %v648
        %710 = vmatpush1.bf16.msra.mxu0 %v647
        %711 = vmatprep.subr.bf16.mxu0 %v646
        %712 = vmatpush1.bf16.msra.mxu0 %v645
        %713 = vmatprep.subr.bf16.mxu0 %v644
        %714 = vmatpush1.bf16.msra.mxu0 %v643
        %715 = vmatprep.subr.bf16.mxu0 %v642
        %716 = vmatpush1.bf16.msra.mxu0 %v641
        %717 = vmatprep.subr.bf16.mxu0 %v640
        %718 = vmatpush1.bf16.msra.mxu0 %v639
        %719 = vmatprep.subr.bf16.mxu0 %v670
        %720 = vmatpush2.bf16.msra.mxu0 %v669
        %721 = vmatprep.subr.bf16.mxu0 %v668
        %722 = vmatpush2.bf16.msra.mxu0 %v667
        %723 = vmatprep.subr.bf16.mxu0 %v666
        %724 = vmatpush2.bf16.msra.mxu0 %v665
        %725 = vmatprep.subr.bf16.mxu0 %v664
        %726 = vmatpush2.bf16.msra.mxu0 %v663
        %727 = vmatprep.subr.bf16.mxu0 %v662
        %728 = vmatpush2.bf16.msra.mxu0 %v661
        %729 = vmatprep.subr.bf16.mxu0 %v660
        %730 = vmatpush2.bf16.msra.mxu0 %v659
        %731 = vmatprep.subr.bf16.mxu0 %v658
        %732 = vmatpush2.bf16.msra.mxu0 %v657
        %733 = vmatprep.subr.bf16.mxu0 %v656
        %734 = vmatpush2.bf16.msra.mxu0 %v655
        %735 = vmatprep.mubr.bf16.mxu0 %v496
        %736 = vmatmul.mubr.bf16.gmra.mxu0 %v495
        %v737 = vpop.f32.mrf.mxu0
        %v738 = vadd.f32 %v538, %v737
        %v739 = vpop.f32.mrf.mxu0
        %v740 = vadd.f32 %v542, %v739
        %v741 = vpop.f32.mrf.mxu0
        %v742 = vadd.f32 %v538, %v741
        %v743 = vpop.f32.mrf.mxu0
        %v744 = vadd.f32 %v542, %v743
        %745 = vmatprep.mubr.bf16.mxu0 %v498
        %746 = vmatmul.mubr.bf16.gmra.mxu0 %v497
        %v747 = vpop.f32.mrf.mxu0
        %v748 = vadd.f32 %v538, %v747
        %v749 = vpop.f32.mrf.mxu0
        %v750 = vadd.f32 %v542, %v749
        %v751 = vpop.f32.mrf.mxu0
        %v752 = vadd.f32 %v538, %v751
        %v753 = vpop.f32.mrf.mxu0
        %v754 = vadd.f32 %v542, %v753
        %755 = vmatprep.mubr.bf16.mxu0 %v500
        %756 = vmatmul.mubr.bf16.gmra.mxu0 %v499
        %v757 = vpop.f32.mrf.mxu0
        %v758 = vadd.f32 %v538, %v757
        %v759 = vpop.f32.mrf.mxu0
        %v760 = vadd.f32 %v542, %v759
        %v761 = vpop.f32.mrf.mxu0
        %v762 = vadd.f32 %v538, %v761
        %v763 = vpop.f32.mrf.mxu0
        %v764 = vadd.f32 %v542, %v763
        %765 = vmatprep.mubr.bf16.mxu0 %v502
        %766 = vmatmul.mubr.bf16.gmra.mxu0 %v501
        %v767 = vpop.f32.mrf.mxu0
        %v768 = vadd.f32 %v538, %v767
        %v769 = vpop.f32.mrf.mxu0
        %v770 = vadd.f32 %v542, %v769
        %v771 = vpop.f32.mrf.mxu0
        %v772 = vadd.f32 %v538, %v771
        %v773 = vpop.f32.mrf.mxu0
        %v774 = vadd.f32 %v542, %v773
        %775 = vdwg.mxu0
        %v776 = vadd.f32 %v738, %v740
        %777 = vadd.xlane.f32.xlu0 %v776
        %v778 = vpop.xlane.xlu0 %777
        %v779 = vadd.f32 %v742, %v744
        %780 = vadd.xlane.f32.xlu0 %v779
        %v781 = vpop.xlane.xlu0 %780
        %v782 = vadd.f32 %v748, %v750
        %783 = vadd.xlane.f32.xlu0 %v782
        %v784 = vpop.xlane.xlu0 %783
        %v785 = vadd.f32 %v752, %v754
        %786 = vadd.xlane.f32.xlu0 %v785
        %v787 = vpop.xlane.xlu0 %786
        %v788 = vadd.f32 %v758, %v760
        %789 = vadd.xlane.f32.xlu0 %v788
        %v790 = vpop.xlane.xlu0 %789
        %v791 = vadd.f32 %v762, %v764
        %792 = vadd.xlane.f32.xlu0 %v791
        %v793 = vpop.xlane.xlu0 %792
        %v794 = vadd.f32 %v768, %v770
        %795 = vadd.xlane.f32.xlu0 %v794
        %v796 = vpop.xlane.xlu0 %795
        %v797 = vadd.f32 %v772, %v774
        %798 = vadd.xlane.f32.xlu0 %v797
        %v799 = vpop.xlane.xlu0 %798
        %v800 = vmul.f32 %v738, %v738
        %v801 = vmul.f32 %v740, %v740
        %v802 = vmul.f32 %v742, %v742
        %v803 = vmul.f32 %v744, %v744
        %v804 = vmul.f32 %v748, %v748
        %v805 = vmul.f32 %v750, %v750
        %v806 = vmul.f32 %v752, %v752
        %v807 = vmul.f32 %v754, %v754
        %v808 = vmul.f32 %v758, %v758
        %v809 = vmul.f32 %v760, %v760
        %v810 = vmul.f32 %v762, %v762
        %v811 = vmul.f32 %v764, %v764
        %v812 = vmul.f32 %v768, %v768
        %v813 = vmul.f32 %v770, %v770
        %v814 = vmul.f32 %v772, %v772
        %v815 = vmul.f32 %v774, %v774
        %v816 = vadd.f32 %v800, %v801
        %817 = vadd.xlane.f32.xlu0 %v816
        %v818 = vpop.xlane.xlu0 %817
        %v819 = vadd.f32 %v802, %v803
        %820 = vadd.xlane.f32.xlu0 %v819
        %v821 = vpop.xlane.xlu0 %820
        %v822 = vadd.f32 %v804, %v805
        %823 = vadd.xlane.f32.xlu0 %v822
        %v824 = vpop.xlane.xlu0 %823
        %v825 = vadd.f32 %v806, %v807
        %826 = vadd.xlane.f32.xlu0 %v825
        %v827 = vpop.xlane.xlu0 %826
        %v828 = vadd.f32 %v808, %v809
        %829 = vadd.xlane.f32.xlu0 %v828
        %v830 = vpop.xlane.xlu0 %829
        %v831 = vadd.f32 %v810, %v811
        %832 = vadd.xlane.f32.xlu0 %v831
        %v833 = vpop.xlane.xlu0 %832
        %v834 = vadd.f32 %v812, %v813
        %835 = vadd.xlane.f32.xlu0 %v834
        %v836 = vpop.xlane.xlu0 %835
        %v837 = vadd.f32 %v814, %v815
        %838 = vadd.xlane.f32.xlu0 %v837
        %v839 = vpop.xlane.xlu0 %838
        %v840 = vmul.f32 %v778, 0.00390625
        %v841 = vmul.f32 %v781, 0.00390625
        %v842 = vmul.f32 %v784, 0.00390625
        %v843 = vmul.f32 %v787, 0.00390625
        %v844 = vmul.f32 %v790, 0.00390625
        %v845 = vmul.f32 %v793, 0.00390625
        %v846 = vmul.f32 %v796, 0.00390625
        %v847 = vmul.f32 %v799, 0.00390625
        %v848 = vmul.f32 %v818, 0.00390625
        %v849 = vmul.f32 %v821, 0.00390625
        %v850 = vmul.f32 %v824, 0.00390625
        %v851 = vmul.f32 %v827, 0.00390625
        %v852 = vmul.f32 %v830, 0.00390625
        %v853 = vmul.f32 %v833, 0.00390625
        %v854 = vmul.f32 %v836, 0.00390625
        %v855 = vmul.f32 %v839, 0.00390625
        %v856 = vmul.f32 %v840, %v840
        %v857 = vmul.f32 %v841, %v841
        %v858 = vmul.f32 %v842, %v842
        %v859 = vmul.f32 %v843, %v843
        %v860 = vmul.f32 %v844, %v844
        %v861 = vmul.f32 %v845, %v845
        %v862 = vmul.f32 %v846, %v846
        %v863 = vmul.f32 %v847, %v847
        %v864 = vsub.f32 %v848, %v856
        %v865 = vsub.f32 %v849, %v857
        %v866 = vsub.f32 %v850, %v858
        %v867 = vsub.f32 %v851, %v859
        %v868 = vsub.f32 %v852, %v860
        %v869 = vsub.f32 %v853, %v861
        %v870 = vsub.f32 %v854, %v862
        %v871 = vsub.f32 %v855, %v863
        %v872 = vmax.f32 %v864, 0.0
        %v873 = vmax.f32 %v865, 0.0
        %v874 = vmax.f32 %v866, 0.0
        %v875 = vmax.f32 %v867, 0.0
        %v876 = vmax.f32 %v868, 0.0
        %v877 = vmax.f32 %v869, 0.0
        %v878 = vmax.f32 %v870, 0.0
        %v879 = vmax.f32 %v871, 0.0
        %v880 = vsub.f32 %v738, %v840
        %v881 = vsub.f32 %v740, %v840
        %v882 = vsub.f32 %v742, %v841
        %v883 = vsub.f32 %v744, %v841
        %v884 = vsub.f32 %v748, %v842
        %v885 = vsub.f32 %v750, %v842
        %v886 = vsub.f32 %v752, %v843
        %v887 = vsub.f32 %v754, %v843
        %v888 = vsub.f32 %v758, %v844
        %v889 = vsub.f32 %v760, %v844
        %v890 = vsub.f32 %v762, %v845
        %v891 = vsub.f32 %v764, %v845
        %v892 = vsub.f32 %v768, %v846
        %v893 = vsub.f32 %v770, %v846
        %v894 = vsub.f32 %v772, %v847
        %v895 = vsub.f32 %v774, %v847
        %v896 = vadd.f32 %v872, 1e-05
        %v897 = vadd.f32 %v873, 1e-05
        %v898 = vadd.f32 %v874, 1e-05
        %v899 = vadd.f32 %v875, 1e-05
        %v900 = vadd.f32 %v876, 1e-05
        %v901 = vadd.f32 %v877, 1e-05
        %v902 = vadd.f32 %v878, 1e-05
        %v903 = vadd.f32 %v879, 1e-05
        %v904 = vrsqrt.pop %v896
        %v905 = vrsqrt.pop %v897
        %v906 = vrsqrt.pop %v898
        %v907 = vrsqrt.pop %v899
        %v908 = vrsqrt.pop %v900
        %v909 = vrsqrt.pop %v901
        %v910 = vrsqrt.pop %v902
        %v911 = vrsqrt.pop %v903
        %v912 = vmul.f32 %v880, %v904
        %v913 = vmul.f32 %v881, %v904
        %v914 = vmul.f32 %v882, %v905
        %v915 = vmul.f32 %v883, %v905
        %v916 = vmul.f32 %v884, %v906
        %v917 = vmul.f32 %v885, %v906
        %v918 = vmul.f32 %v886, %v907
        %v919 = vmul.f32 %v887, %v907
        %v920 = vmul.f32 %v888, %v908
        %v921 = vmul.f32 %v889, %v908
        %v922 = vmul.f32 %v890, %v909
        %v923 = vmul.f32 %v891, %v909
        %v924 = vmul.f32 %v892, %v910
        %v925 = vmul.f32 %v893, %v910
        %v926 = vmul.f32 %v894, %v911
        %v927 = vmul.f32 %v895, %v911
        %v928 = vlaneseq
        %v929 = vshrl.u32 %v928, 7
        %v930 = vsub.s32 3, %v929
        %v931 = vrot.slane %v261, %v930
        %v932 = vlaneseq
        %v933 = vshrl.u32 %v932, 7
        %v934 = vsub.s32 3, %v933
        %v935 = vrot.slane %v262, %v934
        %v936 = vmul.f32 %v912, %v931
        %v937 = vmul.f32 %v913, %v935
        %v938 = vmul.f32 %v914, %v931
        %v939 = vmul.f32 %v915, %v935
        %v940 = vmul.f32 %v916, %v931
        %v941 = vmul.f32 %v917, %v935
        %v942 = vmul.f32 %v918, %v931
        %v943 = vmul.f32 %v919, %v935
        %v944 = vmul.f32 %v920, %v931
        %v945 = vmul.f32 %v921, %v935
        %v946 = vmul.f32 %v922, %v931
        %v947 = vmul.f32 %v923, %v935
        %v948 = vmul.f32 %v924, %v931
        %v949 = vmul.f32 %v925, %v935
        %v950 = vmul.f32 %v926, %v931
        %v951 = vmul.f32 %v927, %v935
        %v952 = vlaneseq
        %v953 = vshrl.u32 %v952, 7
        %v954 = vsub.s32 4, %v953
        %v955 = vrot.slane %v261, %v954
        %v956 = vlaneseq
        %v957 = vshrl.u32 %v956, 7
        %v958 = vsub.s32 4, %v957
        %v959 = vrot.slane %v262, %v958
        %v960 = vadd.f32 %v936, %v955
        %v961 = vadd.f32 %v937, %v959
        %v962 = vadd.f32 %v938, %v955
        %v963 = vadd.f32 %v939, %v959
        %v964 = vadd.f32 %v940, %v955
        %v965 = vadd.f32 %v941, %v959
        %v966 = vadd.f32 %v942, %v955
        %v967 = vadd.f32 %v943, %v959
        %v968 = vadd.f32 %v944, %v955
        %v969 = vadd.f32 %v945, %v959
        %v970 = vadd.f32 %v946, %v955
        %v971 = vadd.f32 %v947, %v959
        %v972 = vadd.f32 %v948, %v955
        %v973 = vadd.f32 %v949, %v959
        %v974 = vadd.f32 %v950, %v955
        %v975 = vadd.f32 %v951, %v959
        %v976 = vmax.f32 %v960, 0.0
        %v977 = vmax.f32 %v961, 0.0
        %v978 = vmax.f32 %v962, 0.0
        %v979 = vmax.f32 %v963, 0.0
        %v980 = vmax.f32 %v964, 0.0
        %v981 = vmax.f32 %v965, 0.0
        %v982 = vmax.f32 %v966, 0.0
        %v983 = vmax.f32 %v967, 0.0
        %v984 = vmax.f32 %v968, 0.0
        %v985 = vmax.f32 %v969, 0.0
        %v986 = vmax.f32 %v970, 0.0
        %v987 = vmax.f32 %v971, 0.0
        %v988 = vmax.f32 %v972, 0.0
        %v989 = vmax.f32 %v973, 0.0
        %v990 = vmax.f32 %v974, 0.0
        %v991 = vmax.f32 %v975, 0.0
        %v992 = vpack.c.bf16 %v978, %v976
        %v993 = vpack.c.bf16 %v979, %v977
        %v994 = vpack.c.bf16 %v982, %v980
        %v995 = vpack.c.bf16 %v983, %v981
        %v996 = vpack.c.bf16 %v986, %v984
        %v997 = vpack.c.bf16 %v987, %v985
        %v998 = vpack.c.bf16 %v990, %v988
        %v999 = vpack.c.bf16 %v991, %v989
        %v1000 = vld [vmem:[#allocation8] sm:$0xff]
        %v1001 = vld [vmem:[#allocation8 + $0x8] sm:$0xff]
        %v1002 = vld [vmem:[#allocation8 + $0x10] sm:$0xff]
        %v1003 = vld [vmem:[#allocation8 + $0x18] sm:$0xff]
        %v1004 = vld [vmem:[#allocation8 + $0x20] sm:$0xff]
        %v1005 = vld [vmem:[#allocation8 + $0x28] sm:$0xff]
        %v1006 = vld [vmem:[#allocation8 + $0x30] sm:$0xff]
        %v1007 = vld [vmem:[#allocation8 + $0x38] sm:$0xff]
        %v1008 = vld [vmem:[#allocation8 + $0x40] sm:$0xff]
        %v1009 = vld [vmem:[#allocation8 + $0x48] sm:$0xff]
        %v1010 = vld [vmem:[#allocation8 + $0x50] sm:$0xff]
        %v1011 = vld [vmem:[#allocation8 + $0x58] sm:$0xff]
        %v1012 = vld [vmem:[#allocation8 + $0x60] sm:$0xff]
        %v1013 = vld [vmem:[#allocation8 + $0x68] sm:$0xff]
        %v1014 = vld [vmem:[#allocation8 + $0x70] sm:$0xff]
        %v1015 = vld [vmem:[#allocation8 + $0x78] sm:$0xff]
        %v1016 = vld [vmem:[#allocation8 + $0x80] sm:$0xff]
        %v1017 = vld [vmem:[#allocation8 + $0x88] sm:$0xff]
        %v1018 = vld [vmem:[#allocation8 + $0x90] sm:$0xff]
        %v1019 = vld [vmem:[#allocation8 + $0x98] sm:$0xff]
        %v1020 = vld [vmem:[#allocation8 + $0xa0] sm:$0xff]
        %v1021 = vld [vmem:[#allocation8 + $0xa8] sm:$0xff]
        %v1022 = vld [vmem:[#allocation8 + $0xb0] sm:$0xff]
        %v1023 = vld [vmem:[#allocation8 + $0xb8] sm:$0xff]
        %v1024 = vld [vmem:[#allocation8 + $0xc0] sm:$0xff]
        %v1025 = vld [vmem:[#allocation8 + $0xc8] sm:$0xff]
        %v1026 = vld [vmem:[#allocation8 + $0xd0] sm:$0xff]
        %v1027 = vld [vmem:[#allocation8 + $0xd8] sm:$0xff]
        %v1028 = vld [vmem:[#allocation8 + $0xe0] sm:$0xff]
        %v1029 = vld [vmem:[#allocation8 + $0xe8] sm:$0xff]
        %v1030 = vld [vmem:[#allocation8 + $0xf0] sm:$0xff]
        %v1031 = vld [vmem:[#allocation8 + $0xf8] sm:$0xff]
        %v1032 = vlaneseq
        %v1033 = vshrl.u32 %v1032, 7
        %v1034 = vsub.s32 5, %v1033
        %v1035 = vrot.slane %v261, %v1034
        %v1036 = vlaneseq
        %v1037 = vshrl.u32 %v1036, 7
        %v1038 = vsub.s32 5, %v1037
        %v1039 = vrot.slane %v262, %v1038
        %v1072 = vunpack.c.l.b16 %v1000
        %v1073 = vunpack.c.h.b16 %v1000
        %v1074 = vunpack.c.l.b16 %v1001
        %v1075 = vunpack.c.h.b16 %v1001
        %v1076 = vunpack.c.l.b16 %v1002
        %v1077 = vunpack.c.h.b16 %v1002
        %v1078 = vunpack.c.l.b16 %v1003
        %v1079 = vunpack.c.h.b16 %v1003
        %v1080 = vunpack.c.l.b16 %v1004
        %v1081 = vunpack.c.h.b16 %v1004
        %v1082 = vunpack.c.l.b16 %v1005
        %v1083 = vunpack.c.h.b16 %v1005
        %v1084 = vunpack.c.l.b16 %v1006
        %v1085 = vunpack.c.h.b16 %v1006
        %v1086 = vunpack.c.l.b16 %v1007
        %v1087 = vunpack.c.h.b16 %v1007
        %v1088 = vunpack.c.l.b16 %v1008
        %v1089 = vunpack.c.h.b16 %v1008
        %v1090 = vunpack.c.l.b16 %v1009
        %v1091 = vunpack.c.h.b16 %v1009
        %v1092 = vunpack.c.l.b16 %v1010
        %v1093 = vunpack.c.h.b16 %v1010
        %v1094 = vunpack.c.l.b16 %v1011
        %v1095 = vunpack.c.h.b16 %v1011
        %v1096 = vunpack.c.l.b16 %v1012
        %v1097 = vunpack.c.h.b16 %v1012
        %v1098 = vunpack.c.l.b16 %v1013
        %v1099 = vunpack.c.h.b16 %v1013
        %v1100 = vunpack.c.l.b16 %v1014
        %v1101 = vunpack.c.h.b16 %v1014
        %v1102 = vunpack.c.l.b16 %v1015
        %v1103 = vunpack.c.h.b16 %v1015
        %v1104 = vunpack.c.l.b16 %v1016
        %v1105 = vunpack.c.h.b16 %v1016
        %v1106 = vunpack.c.l.b16 %v1017
        %v1107 = vunpack.c.h.b16 %v1017
        %v1108 = vunpack.c.l.b16 %v1018
        %v1109 = vunpack.c.h.b16 %v1018
        %v1110 = vunpack.c.l.b16 %v1019
        %v1111 = vunpack.c.h.b16 %v1019
        %v1112 = vunpack.c.l.b16 %v1020
        %v1113 = vunpack.c.h.b16 %v1020
        %v1114 = vunpack.c.l.b16 %v1021
        %v1115 = vunpack.c.h.b16 %v1021
        %v1116 = vunpack.c.l.b16 %v1022
        %v1117 = vunpack.c.h.b16 %v1022
        %v1118 = vunpack.c.l.b16 %v1023
        %v1119 = vunpack.c.h.b16 %v1023
        %v1120 = vunpack.c.l.b16 %v1024
        %v1121 = vunpack.c.h.b16 %v1024
        %v1122 = vunpack.c.l.b16 %v1025
        %v1123 = vunpack.c.h.b16 %v1025
        %v1124 = vunpack.c.l.b16 %v1026
        %v1125 = vunpack.c.h.b16 %v1026
        %v1126 = vunpack.c.l.b16 %v1027
        %v1127 = vunpack.c.h.b16 %v1027
        %v1128 = vunpack.c.l.b16 %v1028
        %v1129 = vunpack.c.h.b16 %v1028
        %v1130 = vunpack.c.l.b16 %v1029
        %v1131 = vunpack.c.h.b16 %v1029
        %v1132 = vunpack.c.l.b16 %v1030
        %v1133 = vunpack.c.h.b16 %v1030
        %v1134 = vunpack.c.l.b16 %v1031
        %v1135 = vunpack.c.h.b16 %v1031
        %v1136 = vpack.c.b16 %v1074, %v1072
        %v1137 = vpack.c.b16 %v1075, %v1073
        %v1138 = vpack.c.b16 %v1078, %v1076
        %v1139 = vpack.c.b16 %v1079, %v1077
        %v1140 = vpack.c.b16 %v1082, %v1080
        %v1141 = vpack.c.b16 %v1083, %v1081
        %v1142 = vpack.c.b16 %v1086, %v1084
        %v1143 = vpack.c.b16 %v1087, %v1085
        %v1144 = vpack.c.b16 %v1090, %v1088
        %v1145 = vpack.c.b16 %v1091, %v1089
        %v1146 = vpack.c.b16 %v1094, %v1092
        %v1147 = vpack.c.b16 %v1095, %v1093
        %v1148 = vpack.c.b16 %v1098, %v1096
        %v1149 = vpack.c.b16 %v1099, %v1097
        %v1150 = vpack.c.b16 %v1102, %v1100
        %v1151 = vpack.c.b16 %v1103, %v1101
        %v1152 = vpack.c.b16 %v1106, %v1104
        %v1153 = vpack.c.b16 %v1107, %v1105
        %v1154 = vpack.c.b16 %v1110, %v1108
        %v1155 = vpack.c.b16 %v1111, %v1109
        %v1156 = vpack.c.b16 %v1114, %v1112
        %v1157 = vpack.c.b16 %v1115, %v1113
        %v1158 = vpack.c.b16 %v1118, %v1116
        %v1159 = vpack.c.b16 %v1119, %v1117
        %v1160 = vpack.c.b16 %v1122, %v1120
        %v1161 = vpack.c.b16 %v1123, %v1121
        %v1162 = vpack.c.b16 %v1126, %v1124
        %v1163 = vpack.c.b16 %v1127, %v1125
        %v1164 = vpack.c.b16 %v1130, %v1128
        %v1165 = vpack.c.b16 %v1131, %v1129
        %v1166 = vpack.c.b16 %v1134, %v1132
        %v1167 = vpack.c.b16 %v1135, %v1133
        %1200 = vmatprep.subr.bf16.mxu0 %v1151
        %1201 = vmatpush1.bf16.msra.mxu0 %v1150
        %1202 = vmatprep.subr.bf16.mxu0 %v1149
        %1203 = vmatpush1.bf16.msra.mxu0 %v1148
        %1204 = vmatprep.subr.bf16.mxu0 %v1147
        %1205 = vmatpush1.bf16.msra.mxu0 %v1146
        %1206 = vmatprep.subr.bf16.mxu0 %v1145
        %1207 = vmatpush1.bf16.msra.mxu0 %v1144
        %1208 = vmatprep.subr.bf16.mxu0 %v1143
        %1209 = vmatpush1.bf16.msra.mxu0 %v1142
        %1210 = vmatprep.subr.bf16.mxu0 %v1141
        %1211 = vmatpush1.bf16.msra.mxu0 %v1140
        %1212 = vmatprep.subr.bf16.mxu0 %v1139
        %1213 = vmatpush1.bf16.msra.mxu0 %v1138
        %1214 = vmatprep.subr.bf16.mxu0 %v1137
        %1215 = vmatpush1.bf16.msra.mxu0 %v1136
        %1216 = vmatprep.subr.bf16.mxu0 %v1167
        %1217 = vmatpush2.bf16.msra.mxu0 %v1166
        %1218 = vmatprep.subr.bf16.mxu0 %v1165
        %1219 = vmatpush2.bf16.msra.mxu0 %v1164
        %1220 = vmatprep.subr.bf16.mxu0 %v1163
        %1221 = vmatpush2.bf16.msra.mxu0 %v1162
        %1222 = vmatprep.subr.bf16.mxu0 %v1161
        %1223 = vmatpush2.bf16.msra.mxu0 %v1160
        %1224 = vmatprep.subr.bf16.mxu0 %v1159
        %1225 = vmatpush2.bf16.msra.mxu0 %v1158
        %1226 = vmatprep.subr.bf16.mxu0 %v1157
        %1227 = vmatpush2.bf16.msra.mxu0 %v1156
        %1228 = vmatprep.subr.bf16.mxu0 %v1155
        %1229 = vmatpush2.bf16.msra.mxu0 %v1154
        %1230 = vmatprep.subr.bf16.mxu0 %v1153
        %1231 = vmatpush2.bf16.msra.mxu0 %v1152
        %1232 = vmatprep.mubr.bf16.mxu0 %v993
        %1233 = vmatmul.mubr.bf16.gmra.mxu0 %v992
        %v1234 = vpop.f32.mrf.mxu0
        %v1235 = vadd.f32 %v1035, %v1234
        %v1236 = vpop.f32.mrf.mxu0
        %v1237 = vadd.f32 %v1039, %v1236
        %v1238 = vpop.f32.mrf.mxu0
        %v1239 = vadd.f32 %v1035, %v1238
        %v1240 = vpop.f32.mrf.mxu0
        %v1241 = vadd.f32 %v1039, %v1240
        %1242 = vmatprep.mubr.bf16.mxu0 %v995
        %1243 = vmatmul.mubr.bf16.gmra.mxu0 %v994
        %v1244 = vpop.f32.mrf.mxu0
        %v1245 = vadd.f32 %v1035, %v1244
        %v1246 = vpop.f32.mrf.mxu0
        %v1247 = vadd.f32 %v1039, %v1246
        %v1248 = vpop.f32.mrf.mxu0
        %v1249 = vadd.f32 %v1035, %v1248
        %v1250 = vpop.f32.mrf.mxu0
        %v1251 = vadd.f32 %v1039, %v1250
        %1252 = vmatprep.mubr.bf16.mxu0 %v997
        %1253 = vmatmul.mubr.bf16.gmra.mxu0 %v996
        %v1254 = vpop.f32.mrf.mxu0
        %v1255 = vadd.f32 %v1035, %v1254
        %v1256 = vpop.f32.mrf.mxu0
        %v1257 = vadd.f32 %v1039, %v1256
        %v1258 = vpop.f32.mrf.mxu0
        %v1259 = vadd.f32 %v1035, %v1258
        %v1260 = vpop.f32.mrf.mxu0
        %v1261 = vadd.f32 %v1039, %v1260
        %1262 = vmatprep.mubr.bf16.mxu0 %v999
        %1263 = vmatmul.mubr.bf16.gmra.mxu0 %v998
        %v1264 = vpop.f32.mrf.mxu0
        %v1265 = vadd.f32 %v1035, %v1264
        %v1266 = vpop.f32.mrf.mxu0
        %v1267 = vadd.f32 %v1039, %v1266
        %v1268 = vpop.f32.mrf.mxu0
        %v1269 = vadd.f32 %v1035, %v1268
        %v1270 = vpop.f32.mrf.mxu0
        %v1271 = vadd.f32 %v1039, %v1270
        %1272 = vdwg.mxu0
        %v1273 = vadd.f32 %v1235, %v263
        %v1274 = vadd.f32 %v1237, %v264
        %v1275 = vadd.f32 %v1239, %v265
        %v1276 = vadd.f32 %v1241, %v266
        %v1277 = vadd.f32 %v1245, %v267
        %v1278 = vadd.f32 %v1247, %v268
        %v1279 = vadd.f32 %v1249, %v269
        %v1280 = vadd.f32 %v1251, %v270
        %v1281 = vadd.f32 %v1255, %v271
        %v1282 = vadd.f32 %v1257, %v272
        %v1283 = vadd.f32 %v1259, %v273
        %v1284 = vadd.f32 %v1261, %v274
        %v1285 = vadd.f32 %v1265, %v275
        %v1286 = vadd.f32 %v1267, %v276
        %v1287 = vadd.f32 %v1269, %v277
        %v1288 = vadd.f32 %v1271, %v278
        %1289 = vst [vmem:[%s258] sm:$0xff] %v1273
        %1290 = vst [vmem:[%s258 + $0x8] sm:$0xff] %v1274
        %1291 = vst [vmem:[%s258 + $0x10] sm:$0xff] %v1275
        %1292 = vst [vmem:[%s258 + $0x18] sm:$0xff] %v1276
        %1293 = vst [vmem:[%s258 + $0x20] sm:$0xff] %v1277
        %1294 = vst [vmem:[%s258 + $0x28] sm:$0xff] %v1278
        %1295 = vst [vmem:[%s258 + $0x30] sm:$0xff] %v1279
        %1296 = vst [vmem:[%s258 + $0x38] sm:$0xff] %v1280
        %1297 = vst [vmem:[%s258 + $0x40] sm:$0xff] %v1281
        %1298 = vst [vmem:[%s258 + $0x48] sm:$0xff] %v1282
        %1299 = vst [vmem:[%s258 + $0x50] sm:$0xff] %v1283
        %1300 = vst [vmem:[%s258 + $0x58] sm:$0xff] %v1284
        %1301 = vst [vmem:[%s258 + $0x60] sm:$0xff] %v1285
        %1302 = vst [vmem:[%s258 + $0x68] sm:$0xff] %v1286
        %1303 = vst [vmem:[%s258 + $0x70] sm:$0xff] %v1287
        %1304 = vst [vmem:[%s258 + $0x78] sm:$0xff] %v1288
        %v1305 = vld [vmem:[%s222 + $0x80] sm:$0xff]
        %v1306 = vld [vmem:[%s222 + $0x88] sm:$0xff]
        %v1307 = vld [vmem:[%s222 + $0x90] sm:$0xff]
        %v1308 = vld [vmem:[%s222 + $0x98] sm:$0xff]
        %v1309 = vld [vmem:[%s222 + $0xa0] sm:$0xff]
        %v1310 = vld [vmem:[%s222 + $0xa8] sm:$0xff]
        %v1311 = vld [vmem:[%s222 + $0xb0] sm:$0xff]
        %v1312 = vld [vmem:[%s222 + $0xb8] sm:$0xff]
        %v1313 = vld [vmem:[%s222 + $0xc0] sm:$0xff]
        %v1314 = vld [vmem:[%s222 + $0xc8] sm:$0xff]
        %v1315 = vld [vmem:[%s222 + $0xd0] sm:$0xff]
        %v1316 = vld [vmem:[%s222 + $0xd8] sm:$0xff]
        %v1317 = vld [vmem:[%s222 + $0xe0] sm:$0xff]
        %v1318 = vld [vmem:[%s222 + $0xe8] sm:$0xff]
        %v1319 = vld [vmem:[%s222 + $0xf0] sm:$0xff]
        %v1320 = vld [vmem:[%s222 + $0xf8] sm:$0xff]
        %v1321 = vadd.f32 %v1305, %v1306
        %1322 = vadd.xlane.f32.xlu0 %v1321
        %v1323 = vpop.xlane.xlu0 %1322
        %v1324 = vadd.f32 %v1307, %v1308
        %1325 = vadd.xlane.f32.xlu0 %v1324
        %v1326 = vpop.xlane.xlu0 %1325
        %v1327 = vadd.f32 %v1309, %v1310
        %1328 = vadd.xlane.f32.xlu0 %v1327
        %v1329 = vpop.xlane.xlu0 %1328
        %v1330 = vadd.f32 %v1311, %v1312
        %1331 = vadd.xlane.f32.xlu0 %v1330
        %v1332 = vpop.xlane.xlu0 %1331
        %v1333 = vadd.f32 %v1313, %v1314
        %1334 = vadd.xlane.f32.xlu0 %v1333
        %v1335 = vpop.xlane.xlu0 %1334
        %v1336 = vadd.f32 %v1315, %v1316
        %1337 = vadd.xlane.f32.xlu0 %v1336
        %v1338 = vpop.xlane.xlu0 %1337
        %v1339 = vadd.f32 %v1317, %v1318
        %1340 = vadd.xlane.f32.xlu0 %v1339
        %v1341 = vpop.xlane.xlu0 %1340
        %v1342 = vadd.f32 %v1319, %v1320
        %1343 = vadd.xlane.f32.xlu0 %v1342
        %v1344 = vpop.xlane.xlu0 %1343
        %v1345 = vmul.f32 %v1305, %v1305
        %v1346 = vmul.f32 %v1306, %v1306
        %v1347 = vmul.f32 %v1307, %v1307
        %v1348 = vmul.f32 %v1308, %v1308
        %v1349 = vmul.f32 %v1309, %v1309
        %v1350 = vmul.f32 %v1310, %v1310
        %v1351 = vmul.f32 %v1311, %v1311
        %v1352 = vmul.f32 %v1312, %v1312
        %v1353 = vmul.f32 %v1313, %v1313
        %v1354 = vmul.f32 %v1314, %v1314
        %v1355 = vmul.f32 %v1315, %v1315
        %v1356 = vmul.f32 %v1316, %v1316
        %v1357 = vmul.f32 %v1317, %v1317
        %v1358 = vmul.f32 %v1318, %v1318
        %v1359 = vmul.f32 %v1319, %v1319
        %v1360 = vmul.f32 %v1320, %v1320
        %v1361 = vadd.f32 %v1345, %v1346
        %1362 = vadd.xlane.f32.xlu0 %v1361
        %v1363 = vpop.xlane.xlu0 %1362
        %v1364 = vadd.f32 %v1347, %v1348
        %1365 = vadd.xlane.f32.xlu0 %v1364
        %v1366 = vpop.xlane.xlu0 %1365
        %v1367 = vadd.f32 %v1349, %v1350
        %1368 = vadd.xlane.f32.xlu0 %v1367
        %v1369 = vpop.xlane.xlu0 %1368
        %v1370 = vadd.f32 %v1351, %v1352
        %1371 = vadd.xlane.f32.xlu0 %v1370
        %v1372 = vpop.xlane.xlu0 %1371
        %v1373 = vadd.f32 %v1353, %v1354
        %1374 = vadd.xlane.f32.xlu0 %v1373
        %v1375 = vpop.xlane.xlu0 %1374
        %v1376 = vadd.f32 %v1355, %v1356
        %1377 = vadd.xlane.f32.xlu0 %v1376
        %v1378 = vpop.xlane.xlu0 %1377
        %v1379 = vadd.f32 %v1357, %v1358
        %1380 = vadd.xlane.f32.xlu0 %v1379
        %v1381 = vpop.xlane.xlu0 %1380
        %v1382 = vadd.f32 %v1359, %v1360
        %1383 = vadd.xlane.f32.xlu0 %v1382
        %v1384 = vpop.xlane.xlu0 %1383
        %v1385 = vmul.f32 %v1323, 0.00390625
        %v1386 = vmul.f32 %v1326, 0.00390625
        %v1387 = vmul.f32 %v1329, 0.00390625
        %v1388 = vmul.f32 %v1332, 0.00390625
        %v1389 = vmul.f32 %v1335, 0.00390625
        %v1390 = vmul.f32 %v1338, 0.00390625
        %v1391 = vmul.f32 %v1341, 0.00390625
        %v1392 = vmul.f32 %v1344, 0.00390625
        %v1393 = vmul.f32 %v1363, 0.00390625
        %v1394 = vmul.f32 %v1366, 0.00390625
        %v1395 = vmul.f32 %v1369, 0.00390625
        %v1396 = vmul.f32 %v1372, 0.00390625
        %v1397 = vmul.f32 %v1375, 0.00390625
        %v1398 = vmul.f32 %v1378, 0.00390625
        %v1399 = vmul.f32 %v1381, 0.00390625
        %v1400 = vmul.f32 %v1384, 0.00390625
        %v1401 = vmul.f32 %v1385, %v1385
        %v1402 = vmul.f32 %v1386, %v1386
        %v1403 = vmul.f32 %v1387, %v1387
        %v1404 = vmul.f32 %v1388, %v1388
        %v1405 = vmul.f32 %v1389, %v1389
        %v1406 = vmul.f32 %v1390, %v1390
        %v1407 = vmul.f32 %v1391, %v1391
        %v1408 = vmul.f32 %v1392, %v1392
        %v1409 = vsub.f32 %v1393, %v1401
        %v1410 = vsub.f32 %v1394, %v1402
        %v1411 = vsub.f32 %v1395, %v1403
        %v1412 = vsub.f32 %v1396, %v1404
        %v1413 = vsub.f32 %v1397, %v1405
        %v1414 = vsub.f32 %v1398, %v1406
        %v1415 = vsub.f32 %v1399, %v1407
        %v1416 = vsub.f32 %v1400, %v1408
        %v1417 = vmax.f32 %v1409, 0.0
        %v1418 = vmax.f32 %v1410, 0.0
        %v1419 = vmax.f32 %v1411, 0.0
        %v1420 = vmax.f32 %v1412, 0.0
        %v1421 = vmax.f32 %v1413, 0.0
        %v1422 = vmax.f32 %v1414, 0.0
        %v1423 = vmax.f32 %v1415, 0.0
        %v1424 = vmax.f32 %v1416, 0.0
        %v1425 = vsub.f32 %v1305, %v1385
        %v1426 = vsub.f32 %v1306, %v1385
        %v1427 = vsub.f32 %v1307, %v1386
        %v1428 = vsub.f32 %v1308, %v1386
        %v1429 = vsub.f32 %v1309, %v1387
        %v1430 = vsub.f32 %v1310, %v1387
        %v1431 = vsub.f32 %v1311, %v1388
        %v1432 = vsub.f32 %v1312, %v1388
        %v1433 = vsub.f32 %v1313, %v1389
        %v1434 = vsub.f32 %v1314, %v1389
        %v1435 = vsub.f32 %v1315, %v1390
        %v1436 = vsub.f32 %v1316, %v1390
        %v1437 = vsub.f32 %v1317, %v1391
        %v1438 = vsub.f32 %v1318, %v1391
        %v1439 = vsub.f32 %v1319, %v1392
        %v1440 = vsub.f32 %v1320, %v1392
        %v1441 = vadd.f32 %v1417, 1e-05
        %v1442 = vadd.f32 %v1418, 1e-05
        %v1443 = vadd.f32 %v1419, 1e-05
        %v1444 = vadd.f32 %v1420, 1e-05
        %v1445 = vadd.f32 %v1421, 1e-05
        %v1446 = vadd.f32 %v1422, 1e-05
        %v1447 = vadd.f32 %v1423, 1e-05
        %v1448 = vadd.f32 %v1424, 1e-05
        %v1449 = vrsqrt.pop %v1441
        %v1450 = vrsqrt.pop %v1442
        %v1451 = vrsqrt.pop %v1443
        %v1452 = vrsqrt.pop %v1444
        %v1453 = vrsqrt.pop %v1445
        %v1454 = vrsqrt.pop %v1446
        %v1455 = vrsqrt.pop %v1447
        %v1456 = vrsqrt.pop %v1448
        %v1457 = vmul.f32 %v1425, %v1449
        %v1458 = vmul.f32 %v1426, %v1449
        %v1459 = vmul.f32 %v1427, %v1450
        %v1460 = vmul.f32 %v1428, %v1450
        %v1461 = vmul.f32 %v1429, %v1451
        %v1462 = vmul.f32 %v1430, %v1451
        %v1463 = vmul.f32 %v1431, %v1452
        %v1464 = vmul.f32 %v1432, %v1452
        %v1465 = vmul.f32 %v1433, %v1453
        %v1466 = vmul.f32 %v1434, %v1453
        %v1467 = vmul.f32 %v1435, %v1454
        %v1468 = vmul.f32 %v1436, %v1454
        %v1469 = vmul.f32 %v1437, %v1455
        %v1470 = vmul.f32 %v1438, %v1455
        %v1471 = vmul.f32 %v1439, %v1456
        %v1472 = vmul.f32 %v1440, %v1456
        %v1473 = vmul.f32 %v1457, %v434
        %v1474 = vmul.f32 %v1458, %v438
        %v1475 = vmul.f32 %v1459, %v434
        %v1476 = vmul.f32 %v1460, %v438
        %v1477 = vmul.f32 %v1461, %v434
        %v1478 = vmul.f32 %v1462, %v438
        %v1479 = vmul.f32 %v1463, %v434
        %v1480 = vmul.f32 %v1464, %v438
        %v1481 = vmul.f32 %v1465, %v434
        %v1482 = vmul.f32 %v1466, %v438
        %v1483 = vmul.f32 %v1467, %v434
        %v1484 = vmul.f32 %v1468, %v438
        %v1485 = vmul.f32 %v1469, %v434
        %v1486 = vmul.f32 %v1470, %v438
        %v1487 = vmul.f32 %v1471, %v434
        %v1488 = vmul.f32 %v1472, %v438
        %v1489 = vadd.f32 %v1473, %v458
        %v1490 = vadd.f32 %v1474, %v462
        %v1491 = vadd.f32 %v1475, %v458
        %v1492 = vadd.f32 %v1476, %v462
        %v1493 = vadd.f32 %v1477, %v458
        %v1494 = vadd.f32 %v1478, %v462
        %v1495 = vadd.f32 %v1479, %v458
        %v1496 = vadd.f32 %v1480, %v462
        %v1497 = vadd.f32 %v1481, %v458
        %v1498 = vadd.f32 %v1482, %v462
        %v1499 = vadd.f32 %v1483, %v458
        %v1500 = vadd.f32 %v1484, %v462
        %v1501 = vadd.f32 %v1485, %v458
        %v1502 = vadd.f32 %v1486, %v462
        %v1503 = vadd.f32 %v1487, %v458
        %v1504 = vadd.f32 %v1488, %v462
        %v1505 = vmax.f32 %v1489, 0.0
        %v1506 = vmax.f32 %v1490, 0.0
        %v1507 = vmax.f32 %v1491, 0.0
        %v1508 = vmax.f32 %v1492, 0.0
        %v1509 = vmax.f32 %v1493, 0.0
        %v1510 = vmax.f32 %v1494, 0.0
        %v1511 = vmax.f32 %v1495, 0.0
        %v1512 = vmax.f32 %v1496, 0.0
        %v1513 = vmax.f32 %v1497, 0.0
        %v1514 = vmax.f32 %v1498, 0.0
        %v1515 = vmax.f32 %v1499, 0.0
        %v1516 = vmax.f32 %v1500, 0.0
        %v1517 = vmax.f32 %v1501, 0.0
        %v1518 = vmax.f32 %v1502, 0.0
        %v1519 = vmax.f32 %v1503, 0.0
        %v1520 = vmax.f32 %v1504, 0.0
        %v1521 = vpack.c.bf16 %v1507, %v1505
        %v1522 = vpack.c.bf16 %v1508, %v1506
        %v1523 = vpack.c.bf16 %v1511, %v1509
        %v1524 = vpack.c.bf16 %v1512, %v1510
        %v1525 = vpack.c.bf16 %v1515, %v1513
        %v1526 = vpack.c.bf16 %v1516, %v1514
        %v1527 = vpack.c.bf16 %v1519, %v1517
        %v1528 = vpack.c.bf16 %v1520, %v1518
        %v1529 = vld [vmem:[#allocation7] sm:$0xff]
        %v1530 = vld [vmem:[#allocation7 + $0x8] sm:$0xff]
        %v1531 = vld [vmem:[#allocation7 + $0x10] sm:$0xff]
        %v1532 = vld [vmem:[#allocation7 + $0x18] sm:$0xff]
        %v1533 = vld [vmem:[#allocation7 + $0x20] sm:$0xff]
        %v1534 = vld [vmem:[#allocation7 + $0x28] sm:$0xff]
        %v1535 = vld [vmem:[#allocation7 + $0x30] sm:$0xff]
        %v1536 = vld [vmem:[#allocation7 + $0x38] sm:$0xff]
        %v1537 = vld [vmem:[#allocation7 + $0x40] sm:$0xff]
        %v1538 = vld [vmem:[#allocation7 + $0x48] sm:$0xff]
        %v1539 = vld [vmem:[#allocation7 + $0x50] sm:$0xff]
        %v1540 = vld [vmem:[#allocation7 + $0x58] sm:$0xff]
        %v1541 = vld [vmem:[#allocation7 + $0x60] sm:$0xff]
        %v1542 = vld [vmem:[#allocation7 + $0x68] sm:$0xff]
        %v1543 = vld [vmem:[#allocation7 + $0x70] sm:$0xff]
        %v1544 = vld [vmem:[#allocation7 + $0x78] sm:$0xff]
        %v1545 = vld [vmem:[#allocation7 + $0x80] sm:$0xff]
        %v1546 = vld [vmem:[#allocation7 + $0x88] sm:$0xff]
        %v1547 = vld [vmem:[#allocation7 + $0x90] sm:$0xff]
        %v1548 = vld [vmem:[#allocation7 + $0x98] sm:$0xff]
        %v1549 = vld [vmem:[#allocation7 + $0xa0] sm:$0xff]
        %v1550 = vld [vmem:[#allocation7 + $0xa8] sm:$0xff]
        %v1551 = vld [vmem:[#allocation7 + $0xb0] sm:$0xff]
        %v1552 = vld [vmem:[#allocation7 + $0xb8] sm:$0xff]
        %v1553 = vld [vmem:[#allocation7 + $0xc0] sm:$0xff]
        %v1554 = vld [vmem:[#allocation7 + $0xc8] sm:$0xff]
        %v1555 = vld [vmem:[#allocation7 + $0xd0] sm:$0xff]
        %v1556 = vld [vmem:[#allocation7 + $0xd8] sm:$0xff]
        %v1557 = vld [vmem:[#allocation7 + $0xe0] sm:$0xff]
        %v1558 = vld [vmem:[#allocation7 + $0xe8] sm:$0xff]
        %v1559 = vld [vmem:[#allocation7 + $0xf0] sm:$0xff]
        %v1560 = vld [vmem:[#allocation7 + $0xf8] sm:$0xff]
        %v1593 = vunpack.c.l.b16 %v1529
        %v1594 = vunpack.c.h.b16 %v1529
        %v1595 = vunpack.c.l.b16 %v1530
        %v1596 = vunpack.c.h.b16 %v1530
        %v1597 = vunpack.c.l.b16 %v1531
        %v1598 = vunpack.c.h.b16 %v1531
        %v1599 = vunpack.c.l.b16 %v1532
        %v1600 = vunpack.c.h.b16 %v1532
        %v1601 = vunpack.c.l.b16 %v1533
        %v1602 = vunpack.c.h.b16 %v1533
        %v1603 = vunpack.c.l.b16 %v1534
        %v1604 = vunpack.c.h.b16 %v1534
        %v1605 = vunpack.c.l.b16 %v1535
        %v1606 = vunpack.c.h.b16 %v1535
        %v1607 = vunpack.c.l.b16 %v1536
        %v1608 = vunpack.c.h.b16 %v1536
        %v1609 = vunpack.c.l.b16 %v1537
        %v1610 = vunpack.c.h.b16 %v1537
        %v1611 = vunpack.c.l.b16 %v1538
        %v1612 = vunpack.c.h.b16 %v1538
        %v1613 = vunpack.c.l.b16 %v1539
        %v1614 = vunpack.c.h.b16 %v1539
        %v1615 = vunpack.c.l.b16 %v1540
        %v1616 = vunpack.c.h.b16 %v1540
        %v1617 = vunpack.c.l.b16 %v1541
        %v1618 = vunpack.c.h.b16 %v1541
        %v1619 = vunpack.c.l.b16 %v1542
        %v1620 = vunpack.c.h.b16 %v1542
        %v1621 = vunpack.c.l.b16 %v1543
        %v1622 = vunpack.c.h.b16 %v1543
        %v1623 = vunpack.c.l.b16 %v1544
        %v1624 = vunpack.c.h.b16 %v1544
        %v1625 = vunpack.c.l.b16 %v1545
        %v1626 = vunpack.c.h.b16 %v1545
        %v1627 = vunpack.c.l.b16 %v1546
        %v1628 = vunpack.c.h.b16 %v1546
        %v1629 = vunpack.c.l.b16 %v1547
        %v1630 = vunpack.c.h.b16 %v1547
        %v1631 = vunpack.c.l.b16 %v1548
        %v1632 = vunpack.c.h.b16 %v1548
        %v1633 = vunpack.c.l.b16 %v1549
        %v1634 = vunpack.c.h.b16 %v1549
        %v1635 = vunpack.c.l.b16 %v1550
        %v1636 = vunpack.c.h.b16 %v1550
        %v1637 = vunpack.c.l.b16 %v1551
        %v1638 = vunpack.c.h.b16 %v1551
        %v1639 = vunpack.c.l.b16 %v1552
        %v1640 = vunpack.c.h.b16 %v1552
        %v1641 = vunpack.c.l.b16 %v1553
        %v1642 = vunpack.c.h.b16 %v1553
        %v1643 = vunpack.c.l.b16 %v1554
        %v1644 = vunpack.c.h.b16 %v1554
        %v1645 = vunpack.c.l.b16 %v1555
        %v1646 = vunpack.c.h.b16 %v1555
        %v1647 = vunpack.c.l.b16 %v1556
        %v1648 = vunpack.c.h.b16 %v1556
        %v1649 = vunpack.c.l.b16 %v1557
        %v1650 = vunpack.c.h.b16 %v1557
        %v1651 = vunpack.c.l.b16 %v1558
        %v1652 = vunpack.c.h.b16 %v1558
        %v1653 = vunpack.c.l.b16 %v1559
        %v1654 = vunpack.c.h.b16 %v1559
        %v1655 = vunpack.c.l.b16 %v1560
        %v1656 = vunpack.c.h.b16 %v1560
        %v1657 = vpack.c.b16 %v1595, %v1593
        %v1658 = vpack.c.b16 %v1596, %v1594
        %v1659 = vpack.c.b16 %v1599, %v1597
        %v1660 = vpack.c.b16 %v1600, %v1598
        %v1661 = vpack.c.b16 %v1603, %v1601
        %v1662 = vpack.c.b16 %v1604, %v1602
        %v1663 = vpack.c.b16 %v1607, %v1605
        %v1664 = vpack.c.b16 %v1608, %v1606
        %v1665 = vpack.c.b16 %v1611, %v1609
        %v1666 = vpack.c.b16 %v1612, %v1610
        %v1667 = vpack.c.b16 %v1615, %v1613
        %v1668 = vpack.c.b16 %v1616, %v1614
        %v1669 = vpack.c.b16 %v1619, %v1617
        %v1670 = vpack.c.b16 %v1620, %v1618
        %v1671 = vpack.c.b16 %v1623, %v1621
        %v1672 = vpack.c.b16 %v1624, %v1622
        %v1673 = vpack.c.b16 %v1627, %v1625
        %v1674 = vpack.c.b16 %v1628, %v1626
        %v1675 = vpack.c.b16 %v1631, %v1629
        %v1676 = vpack.c.b16 %v1632, %v1630
        %v1677 = vpack.c.b16 %v1635, %v1633
        %v1678 = vpack.c.b16 %v1636, %v1634
        %v1679 = vpack.c.b16 %v1639, %v1637
        %v1680 = vpack.c.b16 %v1640, %v1638
        %v1681 = vpack.c.b16 %v1643, %v1641
        %v1682 = vpack.c.b16 %v1644, %v1642
        %v1683 = vpack.c.b16 %v1647, %v1645
        %v1684 = vpack.c.b16 %v1648, %v1646
        %v1685 = vpack.c.b16 %v1651, %v1649
        %v1686 = vpack.c.b16 %v1652, %v1650
        %v1687 = vpack.c.b16 %v1655, %v1653
        %v1688 = vpack.c.b16 %v1656, %v1654
        %1721 = vmatprep.subr.bf16.mxu0 %v1672
        %1722 = vmatpush1.bf16.msra.mxu0 %v1671
        %1723 = vmatprep.subr.bf16.mxu0 %v1670
        %1724 = vmatpush1.bf16.msra.mxu0 %v1669
        %1725 = vmatprep.subr.bf16.mxu0 %v1668
        %1726 = vmatpush1.bf16.msra.mxu0 %v1667
        %1727 = vmatprep.subr.bf16.mxu0 %v1666
        %1728 = vmatpush1.bf16.msra.mxu0 %v1665
        %1729 = vmatprep.subr.bf16.mxu0 %v1664
        %1730 = vmatpush1.bf16.msra.mxu0 %v1663
        %1731 = vmatprep.subr.bf16.mxu0 %v1662
        %1732 = vmatpush1.bf16.msra.mxu0 %v1661
        %1733 = vmatprep.subr.bf16.mxu0 %v1660
        %1734 = vmatpush1.bf16.msra.mxu0 %v1659
        %1735 = vmatprep.subr.bf16.mxu0 %v1658
        %1736 = vmatpush1.bf16.msra.mxu0 %v1657
        %1737 = vmatprep.subr.bf16.mxu0 %v1688
        %1738 = vmatpush2.bf16.msra.mxu0 %v1687
        %1739 = vmatprep.subr.bf16.mxu0 %v1686
        %1740 = vmatpush2.bf16.msra.mxu0 %v1685
        %1741 = vmatprep.subr.bf16.mxu0 %v1684
        %1742 = vmatpush2.bf16.msra.mxu0 %v1683
        %1743 = vmatprep.subr.bf16.mxu0 %v1682
        %1744 = vmatpush2.bf16.msra.mxu0 %v1681
        %1745 = vmatprep.subr.bf16.mxu0 %v1680
        %1746 = vmatpush2.bf16.msra.mxu0 %v1679
        %1747 = vmatprep.subr.bf16.mxu0 %v1678
        %1748 = vmatpush2.bf16.msra.mxu0 %v1677
        %1749 = vmatprep.subr.bf16.mxu0 %v1676
        %1750 = vmatpush2.bf16.msra.mxu0 %v1675
        %1751 = vmatprep.subr.bf16.mxu0 %v1674
        %1752 = vmatpush2.bf16.msra.mxu0 %v1673
        %1753 = vmatprep.mubr.bf16.mxu0 %v1522
        %1754 = vmatmul.mubr.bf16.gmra.mxu0 %v1521
        %v1755 = vpop.f32.mrf.mxu0
        %v1756 = vadd.f32 %v538, %v1755
        %v1757 = vpop.f32.mrf.mxu0
        %v1758 = vadd.f32 %v542, %v1757
        %v1759 = vpop.f32.mrf.mxu0
        %v1760 = vadd.f32 %v538, %v1759
        %v1761 = vpop.f32.mrf.mxu0
        %v1762 = vadd.f32 %v542, %v1761
        %1763 = vmatprep.mubr.bf16.mxu0 %v1524
        %1764 = vmatmul.mubr.bf16.gmra.mxu0 %v1523
        %v1765 = vpop.f32.mrf.mxu0
        %v1766 = vadd.f32 %v538, %v1765
        %v1767 = vpop.f32.mrf.mxu0
        %v1768 = vadd.f32 %v542, %v1767
        %v1769 = vpop.f32.mrf.mxu0
        %v1770 = vadd.f32 %v538, %v1769
        %v1771 = vpop.f32.mrf.mxu0
        %v1772 = vadd.f32 %v542, %v1771
        %1773 = vmatprep.mubr.bf16.mxu0 %v1526
        %1774 = vmatmul.mubr.bf16.gmra.mxu0 %v1525
        %v1775 = vpop.f32.mrf.mxu0
        %v1776 = vadd.f32 %v538, %v1775
        %v1777 = vpop.f32.mrf.mxu0
        %v1778 = vadd.f32 %v542, %v1777
        %v1779 = vpop.f32.mrf.mxu0
        %v1780 = vadd.f32 %v538, %v1779
        %v1781 = vpop.f32.mrf.mxu0
        %v1782 = vadd.f32 %v542, %v1781
        %1783 = vmatprep.mubr.bf16.mxu0 %v1528
        %1784 = vmatmul.mubr.bf16.gmra.mxu0 %v1527
        %v1785 = vpop.f32.mrf.mxu0
        %v1786 = vadd.f32 %v538, %v1785
        %v1787 = vpop.f32.mrf.mxu0
        %v1788 = vadd.f32 %v542, %v1787
        %v1789 = vpop.f32.mrf.mxu0
        %v1790 = vadd.f32 %v538, %v1789
        %v1791 = vpop.f32.mrf.mxu0
        %v1792 = vadd.f32 %v542, %v1791
        %1793 = vdwg.mxu0
        %v1794 = vadd.f32 %v1756, %v1758
        %1795 = vadd.xlane.f32.xlu0 %v1794
        %v1796 = vpop.xlane.xlu0 %1795
        %v1797 = vadd.f32 %v1760, %v1762
        %1798 = vadd.xlane.f32.xlu0 %v1797
        %v1799 = vpop.xlane.xlu0 %1798
        %v1800 = vadd.f32 %v1766, %v1768
        %1801 = vadd.xlane.f32.xlu0 %v1800
        %v1802 = vpop.xlane.xlu0 %1801
        %v1803 = vadd.f32 %v1770, %v1772
        %1804 = vadd.xlane.f32.xlu0 %v1803
        %v1805 = vpop.xlane.xlu0 %1804
        %v1806 = vadd.f32 %v1776, %v1778
        %1807 = vadd.xlane.f32.xlu0 %v1806
        %v1808 = vpop.xlane.xlu0 %1807
        %v1809 = vadd.f32 %v1780, %v1782
        %1810 = vadd.xlane.f32.xlu0 %v1809
        %v1811 = vpop.xlane.xlu0 %1810
        %v1812 = vadd.f32 %v1786, %v1788
        %1813 = vadd.xlane.f32.xlu0 %v1812
        %v1814 = vpop.xlane.xlu0 %1813
        %v1815 = vadd.f32 %v1790, %v1792
        %1816 = vadd.xlane.f32.xlu0 %v1815
        %v1817 = vpop.xlane.xlu0 %1816
        %v1818 = vmul.f32 %v1756, %v1756
        %v1819 = vmul.f32 %v1758, %v1758
        %v1820 = vmul.f32 %v1760, %v1760
        %v1821 = vmul.f32 %v1762, %v1762
        %v1822 = vmul.f32 %v1766, %v1766
        %v1823 = vmul.f32 %v1768, %v1768
        %v1824 = vmul.f32 %v1770, %v1770
        %v1825 = vmul.f32 %v1772, %v1772
        %v1826 = vmul.f32 %v1776, %v1776
        %v1827 = vmul.f32 %v1778, %v1778
        %v1828 = vmul.f32 %v1780, %v1780
        %v1829 = vmul.f32 %v1782, %v1782
        %v1830 = vmul.f32 %v1786, %v1786
        %v1831 = vmul.f32 %v1788, %v1788
        %v1832 = vmul.f32 %v1790, %v1790
        %v1833 = vmul.f32 %v1792, %v1792
        %v1834 = vadd.f32 %v1818, %v1819
        %1835 = vadd.xlane.f32.xlu0 %v1834
        %v1836 = vpop.xlane.xlu0 %1835
        %v1837 = vadd.f32 %v1820, %v1821
        %1838 = vadd.xlane.f32.xlu0 %v1837
        %v1839 = vpop.xlane.xlu0 %1838
        %v1840 = vadd.f32 %v1822, %v1823
        %1841 = vadd.xlane.f32.xlu0 %v1840
        %v1842 = vpop.xlane.xlu0 %1841
        %v1843 = vadd.f32 %v1824, %v1825
        %1844 = vadd.xlane.f32.xlu0 %v1843
        %v1845 = vpop.xlane.xlu0 %1844
        %v1846 = vadd.f32 %v1826, %v1827
        %1847 = vadd.xlane.f32.xlu0 %v1846
        %v1848 = vpop.xlane.xlu0 %1847
        %v1849 = vadd.f32 %v1828, %v1829
        %1850 = vadd.xlane.f32.xlu0 %v1849
        %v1851 = vpop.xlane.xlu0 %1850
        %v1852 = vadd.f32 %v1830, %v1831
        %1853 = vadd.xlane.f32.xlu0 %v1852
        %v1854 = vpop.xlane.xlu0 %1853
        %v1855 = vadd.f32 %v1832, %v1833
        %1856 = vadd.xlane.f32.xlu0 %v1855
        %v1857 = vpop.xlane.xlu0 %1856
        %v1858 = vmul.f32 %v1796, 0.00390625
        %v1859 = vmul.f32 %v1799, 0.00390625
        %v1860 = vmul.f32 %v1802, 0.00390625
        %v1861 = vmul.f32 %v1805, 0.00390625
        %v1862 = vmul.f32 %v1808, 0.00390625
        %v1863 = vmul.f32 %v1811, 0.00390625
        %v1864 = vmul.f32 %v1814, 0.00390625
        %v1865 = vmul.f32 %v1817, 0.00390625
        %v1866 = vmul.f32 %v1836, 0.00390625
        %v1867 = vmul.f32 %v1839, 0.00390625
        %v1868 = vmul.f32 %v1842, 0.00390625
        %v1869 = vmul.f32 %v1845, 0.00390625
        %v1870 = vmul.f32 %v1848, 0.00390625
        %v1871 = vmul.f32 %v1851, 0.00390625
        %v1872 = vmul.f32 %v1854, 0.00390625
        %v1873 = vmul.f32 %v1857, 0.00390625
        %v1874 = vmul.f32 %v1858, %v1858
        %v1875 = vmul.f32 %v1859, %v1859
        %v1876 = vmul.f32 %v1860, %v1860
        %v1877 = vmul.f32 %v1861, %v1861
        %v1878 = vmul.f32 %v1862, %v1862
        %v1879 = vmul.f32 %v1863, %v1863
        %v1880 = vmul.f32 %v1864, %v1864
        %v1881 = vmul.f32 %v1865, %v1865
        %v1882 = vsub.f32 %v1866, %v1874
        %v1883 = vsub.f32 %v1867, %v1875
        %v1884 = vsub.f32 %v1868, %v1876
        %v1885 = vsub.f32 %v1869, %v1877
        %v1886 = vsub.f32 %v1870, %v1878
        %v1887 = vsub.f32 %v1871, %v1879
        %v1888 = vsub.f32 %v1872, %v1880
        %v1889 = vsub.f32 %v1873, %v1881
        %v1890 = vmax.f32 %v1882, 0.0
        %v1891 = vmax.f32 %v1883, 0.0
        %v1892 = vmax.f32 %v1884, 0.0
        %v1893 = vmax.f32 %v1885, 0.0
        %v1894 = vmax.f32 %v1886, 0.0
        %v1895 = vmax.f32 %v1887, 0.0
        %v1896 = vmax.f32 %v1888, 0.0
        %v1897 = vmax.f32 %v1889, 0.0
        %v1898 = vsub.f32 %v1756, %v1858
        %v1899 = vsub.f32 %v1758, %v1858
        %v1900 = vsub.f32 %v1760, %v1859
        %v1901 = vsub.f32 %v1762, %v1859
        %v1902 = vsub.f32 %v1766, %v1860
        %v1903 = vsub.f32 %v1768, %v1860
        %v1904 = vsub.f32 %v1770, %v1861
        %v1905 = vsub.f32 %v1772, %v1861
        %v1906 = vsub.f32 %v1776, %v1862
        %v1907 = vsub.f32 %v1778, %v1862
        %v1908 = vsub.f32 %v1780, %v1863
        %v1909 = vsub.f32 %v1782, %v1863
        %v1910 = vsub.f32 %v1786, %v1864
        %v1911 = vsub.f32 %v1788, %v1864
        %v1912 = vsub.f32 %v1790, %v1865
        %v1913 = vsub.f32 %v1792, %v1865
        %v1914 = vadd.f32 %v1890, 1e-05
        %v1915 = vadd.f32 %v1891, 1e-05
        %v1916 = vadd.f32 %v1892, 1e-05
        %v1917 = vadd.f32 %v1893, 1e-05
        %v1918 = vadd.f32 %v1894, 1e-05
        %v1919 = vadd.f32 %v1895, 1e-05
        %v1920 = vadd.f32 %v1896, 1e-05
        %v1921 = vadd.f32 %v1897, 1e-05
        %v1922 = vrsqrt.pop %v1914
        %v1923 = vrsqrt.pop %v1915
        %v1924 = vrsqrt.pop %v1916
        %v1925 = vrsqrt.pop %v1917
        %v1926 = vrsqrt.pop %v1918
        %v1927 = vrsqrt.pop %v1919
        %v1928 = vrsqrt.pop %v1920
        %v1929 = vrsqrt.pop %v1921
        %v1930 = vmul.f32 %v1898, %v1922
        %v1931 = vmul.f32 %v1899, %v1922
        %v1932 = vmul.f32 %v1900, %v1923
        %v1933 = vmul.f32 %v1901, %v1923
        %v1934 = vmul.f32 %v1902, %v1924
        %v1935 = vmul.f32 %v1903, %v1924
        %v1936 = vmul.f32 %v1904, %v1925
        %v1937 = vmul.f32 %v1905, %v1925
        %v1938 = vmul.f32 %v1906, %v1926
        %v1939 = vmul.f32 %v1907, %v1926
        %v1940 = vmul.f32 %v1908, %v1927
        %v1941 = vmul.f32 %v1909, %v1927
        %v1942 = vmul.f32 %v1910, %v1928
        %v1943 = vmul.f32 %v1911, %v1928
        %v1944 = vmul.f32 %v1912, %v1929
        %v1945 = vmul.f32 %v1913, %v1929
        %v1946 = vmul.f32 %v1930, %v931
        %v1947 = vmul.f32 %v1931, %v935
        %v1948 = vmul.f32 %v1932, %v931
        %v1949 = vmul.f32 %v1933, %v935
        %v1950 = vmul.f32 %v1934, %v931
        %v1951 = vmul.f32 %v1935, %v935
        %v1952 = vmul.f32 %v1936, %v931
        %v1953 = vmul.f32 %v1937, %v935
        %v1954 = vmul.f32 %v1938, %v931
        %v1955 = vmul.f32 %v1939, %v935
        %v1956 = vmul.f32 %v1940, %v931
        %v1957 = vmul.f32 %v1941, %v935
        %v1958 = vmul.f32 %v1942, %v931
        %v1959 = vmul.f32 %v1943, %v935
        %v1960 = vmul.f32 %v1944, %v931
        %v1961 = vmul.f32 %v1945, %v935
        %v1962 = vadd.f32 %v1946, %v955
        %v1963 = vadd.f32 %v1947, %v959
        %v1964 = vadd.f32 %v1948, %v955
        %v1965 = vadd.f32 %v1949, %v959
        %v1966 = vadd.f32 %v1950, %v955
        %v1967 = vadd.f32 %v1951, %v959
        %v1968 = vadd.f32 %v1952, %v955
        %v1969 = vadd.f32 %v1953, %v959
        %v1970 = vadd.f32 %v1954, %v955
        %v1971 = vadd.f32 %v1955, %v959
        %v1972 = vadd.f32 %v1956, %v955
        %v1973 = vadd.f32 %v1957, %v959
        %v1974 = vadd.f32 %v1958, %v955
        %v1975 = vadd.f32 %v1959, %v959
        %v1976 = vadd.f32 %v1960, %v955
        %v1977 = vadd.f32 %v1961, %v959
        %v1978 = vmax.f32 %v1962, 0.0
        %v1979 = vmax.f32 %v1963, 0.0
        %v1980 = vmax.f32 %v1964, 0.0
        %v1981 = vmax.f32 %v1965, 0.0
        %v1982 = vmax.f32 %v1966, 0.0
        %v1983 = vmax.f32 %v1967, 0.0
        %v1984 = vmax.f32 %v1968, 0.0
        %v1985 = vmax.f32 %v1969, 0.0
        %v1986 = vmax.f32 %v1970, 0.0
        %v1987 = vmax.f32 %v1971, 0.0
        %v1988 = vmax.f32 %v1972, 0.0
        %v1989 = vmax.f32 %v1973, 0.0
        %v1990 = vmax.f32 %v1974, 0.0
        %v1991 = vmax.f32 %v1975, 0.0
        %v1992 = vmax.f32 %v1976, 0.0
        %v1993 = vmax.f32 %v1977, 0.0
        %v1994 = vpack.c.bf16 %v1980, %v1978
        %v1995 = vpack.c.bf16 %v1981, %v1979
        %v1996 = vpack.c.bf16 %v1984, %v1982
        %v1997 = vpack.c.bf16 %v1985, %v1983
        %v1998 = vpack.c.bf16 %v1988, %v1986
        %v1999 = vpack.c.bf16 %v1989, %v1987
        %v2000 = vpack.c.bf16 %v1992, %v1990
        %v2001 = vpack.c.bf16 %v1993, %v1991
        %v2002 = vld [vmem:[#allocation8] sm:$0xff]
        %v2003 = vld [vmem:[#allocation8 + $0x8] sm:$0xff]
        %v2004 = vld [vmem:[#allocation8 + $0x10] sm:$0xff]
        %v2005 = vld [vmem:[#allocation8 + $0x18] sm:$0xff]
        %v2006 = vld [vmem:[#allocation8 + $0x20] sm:$0xff]
        %v2007 = vld [vmem:[#allocation8 + $0x28] sm:$0xff]
        %v2008 = vld [vmem:[#allocation8 + $0x30] sm:$0xff]
        %v2009 = vld [vmem:[#allocation8 + $0x38] sm:$0xff]
        %v2010 = vld [vmem:[#allocation8 + $0x40] sm:$0xff]
        %v2011 = vld [vmem:[#allocation8 + $0x48] sm:$0xff]
        %v2012 = vld [vmem:[#allocation8 + $0x50] sm:$0xff]
        %v2013 = vld [vmem:[#allocation8 + $0x58] sm:$0xff]
        %v2014 = vld [vmem:[#allocation8 + $0x60] sm:$0xff]
        %v2015 = vld [vmem:[#allocation8 + $0x68] sm:$0xff]
        %v2016 = vld [vmem:[#allocation8 + $0x70] sm:$0xff]
        %v2017 = vld [vmem:[#allocation8 + $0x78] sm:$0xff]
        %v2018 = vld [vmem:[#allocation8 + $0x80] sm:$0xff]
        %v2019 = vld [vmem:[#allocation8 + $0x88] sm:$0xff]
        %v2020 = vld [vmem:[#allocation8 + $0x90] sm:$0xff]
        %v2021 = vld [vmem:[#allocation8 + $0x98] sm:$0xff]
        %v2022 = vld [vmem:[#allocation8 + $0xa0] sm:$0xff]
        %v2023 = vld [vmem:[#allocation8 + $0xa8] sm:$0xff]
        %v2024 = vld [vmem:[#allocation8 + $0xb0] sm:$0xff]
        %v2025 = vld [vmem:[#allocation8 + $0xb8] sm:$0xff]
        %v2026 = vld [vmem:[#allocation8 + $0xc0] sm:$0xff]
        %v2027 = vld [vmem:[#allocation8 + $0xc8] sm:$0xff]
        %v2028 = vld [vmem:[#allocation8 + $0xd0] sm:$0xff]
        %v2029 = vld [vmem:[#allocation8 + $0xd8] sm:$0xff]
        %v2030 = vld [vmem:[#allocation8 + $0xe0] sm:$0xff]
        %v2031 = vld [vmem:[#allocation8 + $0xe8] sm:$0xff]
        %v2032 = vld [vmem:[#allocation8 + $0xf0] sm:$0xff]
        %v2033 = vld [vmem:[#allocation8 + $0xf8] sm:$0xff]
        %v2066 = vunpack.c.l.b16 %v2002
        %v2067 = vunpack.c.h.b16 %v2002
        %v2068 = vunpack.c.l.b16 %v2003
        %v2069 = vunpack.c.h.b16 %v2003
        %v2070 = vunpack.c.l.b16 %v2004
        %v2071 = vunpack.c.h.b16 %v2004
        %v2072 = vunpack.c.l.b16 %v2005
        %v2073 = vunpack.c.h.b16 %v2005
        %v2074 = vunpack.c.l.b16 %v2006
        %v2075 = vunpack.c.h.b16 %v2006
        %v2076 = vunpack.c.l.b16 %v2007
        %v2077 = vunpack.c.h.b16 %v2007
        %v2078 = vunpack.c.l.b16 %v2008
        %v2079 = vunpack.c.h.b16 %v2008
        %v2080 = vunpack.c.l.b16 %v2009
        %v2081 = vunpack.c.h.b16 %v2009
        %v2082 = vunpack.c.l.b16 %v2010
        %v2083 = vunpack.c.h.b16 %v2010
        %v2084 = vunpack.c.l.b16 %v2011
        %v2085 = vunpack.c.h.b16 %v2011
        %v2086 = vunpack.c.l.b16 %v2012
        %v2087 = vunpack.c.h.b16 %v2012
        %v2088 = vunpack.c.l.b16 %v2013
        %v2089 = vunpack.c.h.b16 %v2013
        %v2090 = vunpack.c.l.b16 %v2014
        %v2091 = vunpack.c.h.b16 %v2014
        %v2092 = vunpack.c.l.b16 %v2015
        %v2093 = vunpack.c.h.b16 %v2015
        %v2094 = vunpack.c.l.b16 %v2016
        %v2095 = vunpack.c.h.b16 %v2016
        %v2096 = vunpack.c.l.b16 %v2017
        %v2097 = vunpack.c.h.b16 %v2017
        %v2098 = vunpack.c.l.b16 %v2018
        %v2099 = vunpack.c.h.b16 %v2018
        %v2100 = vunpack.c.l.b16 %v2019
        %v2101 = vunpack.c.h.b16 %v2019
        %v2102 = vunpack.c.l.b16 %v2020
        %v2103 = vunpack.c.h.b16 %v2020
        %v2104 = vunpack.c.l.b16 %v2021
        %v2105 = vunpack.c.h.b16 %v2021
        %v2106 = vunpack.c.l.b16 %v2022
        %v2107 = vunpack.c.h.b16 %v2022
        %v2108 = vunpack.c.l.b16 %v2023
        %v2109 = vunpack.c.h.b16 %v2023
        %v2110 = vunpack.c.l.b16 %v2024
        %v2111 = vunpack.c.h.b16 %v2024
        %v2112 = vunpack.c.l.b16 %v2025
        %v2113 = vunpack.c.h.b16 %v2025
        %v2114 = vunpack.c.l.b16 %v2026
        %v2115 = vunpack.c.h.b16 %v2026
        %v2116 = vunpack.c.l.b16 %v2027
        %v2117 = vunpack.c.h.b16 %v2027
        %v2118 = vunpack.c.l.b16 %v2028
        %v2119 = vunpack.c.h.b16 %v2028
        %v2120 = vunpack.c.l.b16 %v2029
        %v2121 = vunpack.c.h.b16 %v2029
        %v2122 = vunpack.c.l.b16 %v2030
        %v2123 = vunpack.c.h.b16 %v2030
        %v2124 = vunpack.c.l.b16 %v2031
        %v2125 = vunpack.c.h.b16 %v2031
        %v2126 = vunpack.c.l.b16 %v2032
        %v2127 = vunpack.c.h.b16 %v2032
        %v2128 = vunpack.c.l.b16 %v2033
        %v2129 = vunpack.c.h.b16 %v2033
        %v2130 = vpack.c.b16 %v2068, %v2066
        %v2131 = vpack.c.b16 %v2069, %v2067
        %v2132 = vpack.c.b16 %v2072, %v2070
        %v2133 = vpack.c.b16 %v2073, %v2071
        %v2134 = vpack.c.b16 %v2076, %v2074
        %v2135 = vpack.c.b16 %v2077, %v2075
        %v2136 = vpack.c.b16 %v2080, %v2078
        %v2137 = vpack.c.b16 %v2081, %v2079
        %v2138 = vpack.c.b16 %v2084, %v2082
        %v2139 = vpack.c.b16 %v2085, %v2083
        %v2140 = vpack.c.b16 %v2088, %v2086
        %v2141 = vpack.c.b16 %v2089, %v2087
        %v2142 = vpack.c.b16 %v2092, %v2090
        %v2143 = vpack.c.b16 %v2093, %v2091
        %v2144 = vpack.c.b16 %v2096, %v2094
        %v2145 = vpack.c.b16 %v2097, %v2095
        %v2146 = vpack.c.b16 %v2100, %v2098
        %v2147 = vpack.c.b16 %v2101, %v2099
        %v2148 = vpack.c.b16 %v2104, %v2102
        %v2149 = vpack.c.b16 %v2105, %v2103
        %v2150 = vpack.c.b16 %v2108, %v2106
        %v2151 = vpack.c.b16 %v2109, %v2107
        %v2152 = vpack.c.b16 %v2112, %v2110
        %v2153 = vpack.c.b16 %v2113, %v2111
        %v2154 = vpack.c.b16 %v2116, %v2114
        %v2155 = vpack.c.b16 %v2117, %v2115
        %v2156 = vpack.c.b16 %v2120, %v2118
        %v2157 = vpack.c.b16 %v2121, %v2119
        %v2158 = vpack.c.b16 %v2124, %v2122
        %v2159 = vpack.c.b16 %v2125, %v2123
        %v2160 = vpack.c.b16 %v2128, %v2126
        %v2161 = vpack.c.b16 %v2129, %v2127
        %2194 = vmatprep.subr.bf16.mxu0 %v2145
        %2195 = vmatpush1.bf16.msra.mxu0 %v2144
        %2196 = vmatprep.subr.bf16.mxu0 %v2143
        %2197 = vmatpush1.bf16.msra.mxu0 %v2142
        %2198 = vmatprep.subr.bf16.mxu0 %v2141
        %2199 = vmatpush1.bf16.msra.mxu0 %v2140
        %2200 = vmatprep.subr.bf16.mxu0 %v2139
        %2201 = vmatpush1.bf16.msra.mxu0 %v2138
        %2202 = vmatprep.subr.bf16.mxu0 %v2137
        %2203 = vmatpush1.bf16.msra.mxu0 %v2136
        %2204 = vmatprep.subr.bf16.mxu0 %v2135
        %2205 = vmatpush1.bf16.msra.mxu0 %v2134
        %2206 = vmatprep.subr.bf16.mxu0 %v2133
        %2207 = vmatpush1.bf16.msra.mxu0 %v2132
        %2208 = vmatprep.subr.bf16.mxu0 %v2131
        %2209 = vmatpush1.bf16.msra.mxu0 %v2130
        %2210 = vmatprep.subr.bf16.mxu0 %v2161
        %2211 = vmatpush2.bf16.msra.mxu0 %v2160
        %2212 = vmatprep.subr.bf16.mxu0 %v2159
        %2213 = vmatpush2.bf16.msra.mxu0 %v2158
        %2214 = vmatprep.subr.bf16.mxu0 %v2157
        %2215 = vmatpush2.bf16.msra.mxu0 %v2156
        %2216 = vmatprep.subr.bf16.mxu0 %v2155
        %2217 = vmatpush2.bf16.msra.mxu0 %v2154
        %2218 = vmatprep.subr.bf16.mxu0 %v2153
        %2219 = vmatpush2.bf16.msra.mxu0 %v2152
        %2220 = vmatprep.subr.bf16.mxu0 %v2151
        %2221 = vmatpush2.bf16.msra.mxu0 %v2150
        %2222 = vmatprep.subr.bf16.mxu0 %v2149
        %2223 = vmatpush2.bf16.msra.mxu0 %v2148
        %2224 = vmatprep.subr.bf16.mxu0 %v2147
        %2225 = vmatpush2.bf16.msra.mxu0 %v2146
        %2226 = vmatprep.mubr.bf16.mxu0 %v1995
        %2227 = vmatmul.mubr.bf16.gmra.mxu0 %v1994
        %v2228 = vpop.f32.mrf.mxu0
        %v2229 = vadd.f32 %v1035, %v2228
        %v2230 = vpop.f32.mrf.mxu0
        %v2231 = vadd.f32 %v1039, %v2230
        %v2232 = vpop.f32.mrf.mxu0
        %v2233 = vadd.f32 %v1035, %v2232
        %v2234 = vpop.f32.mrf.mxu0
        %v2235 = vadd.f32 %v1039, %v2234
        %2236 = vmatprep.mubr.bf16.mxu0 %v1997
        %2237 = vmatmul.mubr.bf16.gmra.mxu0 %v1996
        %v2238 = vpop.f32.mrf.mxu0
        %v2239 = vadd.f32 %v1035, %v2238
        %v2240 = vpop.f32.mrf.mxu0
        %v2241 = vadd.f32 %v1039, %v2240
        %v2242 = vpop.f32.mrf.mxu0
        %v2243 = vadd.f32 %v1035, %v2242
        %v2244 = vpop.f32.mrf.mxu0
        %v2245 = vadd.f32 %v1039, %v2244
        %2246 = vmatprep.mubr.bf16.mxu0 %v1999
        %2247 = vmatmul.mubr.bf16.gmra.mxu0 %v1998
        %v2248 = vpop.f32.mrf.mxu0
        %v2249 = vadd.f32 %v1035, %v2248
        %v2250 = vpop.f32.mrf.mxu0
        %v2251 = vadd.f32 %v1039, %v2250
        %v2252 = vpop.f32.mrf.mxu0
        %v2253 = vadd.f32 %v1035, %v2252
        %v2254 = vpop.f32.mrf.mxu0
        %v2255 = vadd.f32 %v1039, %v2254
        %2256 = vmatprep.mubr.bf16.mxu0 %v2001
        %2257 = vmatmul.mubr.bf16.gmra.mxu0 %v2000
        %v2258 = vpop.f32.mrf.mxu0
        %v2259 = vadd.f32 %v1035, %v2258
        %v2260 = vpop.f32.mrf.mxu0
        %v2261 = vadd.f32 %v1039, %v2260
        %v2262 = vpop.f32.mrf.mxu0
        %v2263 = vadd.f32 %v1035, %v2262
        %v2264 = vpop.f32.mrf.mxu0
        %v2265 = vadd.f32 %v1039, %v2264
        %2266 = vdwg.mxu0
        %v2267 = vadd.f32 %v2229, %v1305
        %v2268 = vadd.f32 %v2231, %v1306
        %v2269 = vadd.f32 %v2233, %v1307
        %v2270 = vadd.f32 %v2235, %v1308
        %v2271 = vadd.f32 %v2239, %v1309
        %v2272 = vadd.f32 %v2241, %v1310
        %v2273 = vadd.f32 %v2243, %v1311
        %v2274 = vadd.f32 %v2245, %v1312
        %v2275 = vadd.f32 %v2249, %v1313
        %v2276 = vadd.f32 %v2251, %v1314
        %v2277 = vadd.f32 %v2253, %v1315
        %v2278 = vadd.f32 %v2255, %v1316
        %v2279 = vadd.f32 %v2259, %v1317
        %v2280 = vadd.f32 %v2261, %v1318
        %v2281 = vadd.f32 %v2263, %v1319
        %v2282 = vadd.f32 %v2265, %v1320
        %2283 = vst [vmem:[%s258 + $0x80] sm:$0xff] %v2267
        %2284 = vst [vmem:[%s258 + $0x88] sm:$0xff] %v2268
        %2285 = vst [vmem:[%s258 + $0x90] sm:$0xff] %v2269
        %2286 = vst [vmem:[%s258 + $0x98] sm:$0xff] %v2270
        %2287 = vst [vmem:[%s258 + $0xa0] sm:$0xff] %v2271
        %2288 = vst [vmem:[%s258 + $0xa8] sm:$0xff] %v2272
        %2289 = vst [vmem:[%s258 + $0xb0] sm:$0xff] %v2273
        %2290 = vst [vmem:[%s258 + $0xb8] sm:$0xff] %v2274
        %2291 = vst [vmem:[%s258 + $0xc0] sm:$0xff] %v2275
        %2292 = vst [vmem:[%s258 + $0xc8] sm:$0xff] %v2276
        %2293 = vst [vmem:[%s258 + $0xd0] sm:$0xff] %v2277
        %2294 = vst [vmem:[%s258 + $0xd8] sm:$0xff] %v2278
        %2295 = vst [vmem:[%s258 + $0xe0] sm:$0xff] %v2279
        %2296 = vst [vmem:[%s258 + $0xe8] sm:$0xff] %v2280
        %2297 = vst [vmem:[%s258 + $0xf0] sm:$0xff] %v2281
        %2298 = vst [vmem:[%s258 + $0xf8] sm:$0xff] %v2282
        %s2299 = sand.u32 %s120, 1
        %s2300 = scalar_lea.sflag [#allocation4], %s2299
        %s2301 = sand.u32 %s120, 1
        %s2302 = smul.addr %s2301, 256
        %s2303 = scalar_lea.vmem [#allocation10], %s2302
        // Predicated region
        $region53: #{tpu_custom_call.1} parent=35 // pred_check
          %p2304 = pneg %p130
        $region54: #{tpu_custom_call.1} parent=35 // pred_check_branch
          %2306 = sbr.rel (%p2304) target = $region56
        $region55: #{tpu_custom_call.1} parent=35 // pred_region
          %s2307 = smul.u32 16, %s23
          %s2309 = ssub.s32 4096, 4096
          %2310 = vsyncadd %s2300, %s2309
          %s2311 = smul.addr %s2307, 2
          %s2312 = smul.addr %s2311, 128
          %s2313 = scalar_lea.hbm %s4, %s2312
          %s2314 = sshll.u32 %s2303, 4
          %s2315 = int_to_ptr.vmem [resolvable:$true] %s2314
          %2320 = dma.vmem_to_hbm [thread:$0]  %s2315, 4096, %s2313, %s2300, 256, 256, 16
        $region56: #{tpu_custom_call.1} parent=35 // pred_fallthru
          _
      $region36: #{tpu_custom_call.1} parent=5 // pred_fallthru
        _
      %p2321 = scmp.le.s32.totalorder 2, %s18
      // Predicated region
      $region57: #{tpu_custom_call.1} parent=5 // pred_check
        %p2322 = pneg %p2321
      $region58: #{tpu_custom_call.1} parent=5 // pred_check_branch
        %2324 = sbr.rel (%p2322) target = $region60
      $region59: #{tpu_custom_call.1} parent=5 // pred_region
        %s2325 = ssub.s32 %s18, 2
        // Predicated region
        $region61: #{tpu_custom_call.1} parent=59 // pred_check
          %p2326 = pneg %p136
        $region62: #{tpu_custom_call.1} parent=59 // pred_check_branch
          %2328 = sbr.rel (%p2326) target = $region64
        $region63: #{tpu_custom_call.1} parent=59 // pred_region
          %s2329 = sand.u32 %s121, 1
          %s2330 = scalar_lea.sflag [#allocation4], %s2329
          %s2331 = sand.u32 %s121, 1
          %s2332 = smul.addr %s2331, 256
          %s2333 = scalar_lea.vmem [#allocation10], %s2332
          %2334 = dma.done %s2330, 4096
        $region64: #{tpu_custom_call.1} parent=59 // pred_fallthru
          _
      $region60: #{tpu_custom_call.1} parent=5 // pred_fallthru
        _
    $region6: #{tpu_custom_call.1} parent=1 // loop_footer
      %s22 = sadd.s32 1, %s18
    $region7: #{tpu_custom_call.1} parent=1 // loop_footer_branch
      %17 = sbr.rel target = $region3
    $region8: #{tpu_custom_call.1} parent=1 // loop_exit
      _
    %2335 = vsyncpa [#allocation3], 1
    %s2336 = scalar_lea.sflag [#allocation3], 1
    %2337 = vsyncpa %s2336, 1
    %2338 = vsyncpa [#allocation6], 1
    %2339 = vsyncpa [#allocation9], 1
    %2340 = vsyncpa [#allocation4], 1
    %s2341 = scalar_lea.sflag [#allocation4], 1
    %2342 = vsyncpa %s2341, 1

</llo_original>
